<compile_context>
chip_gen: v7x
topology: tpu7x:2x2x1
jax: 0.10.0
libtpu: 0.0.40
codegen_flags: <defaults>
</compile_context>

<pallas_src>
import jax
import jax.numpy as jnp
from jax.experimental import pallas as pl
from jax.experimental.pallas import tpu as pltpu

HIDDEN = 32   # hidden width of both MLPs
FEAT = 16     # feature dimension produced by feature_map

# Packed-parameter slab layout (rows x 128 lanes, f32):
#   rows   0: 32, cols 0:4   W1^T (32, 4)
#   rows  32: 64, cols 0:32  W2^T (32, 32)
#   rows  64: 96, cols 0:32  Wf^T (32, 32)   fused density layer-1: Wf = W3 @ Wd1
#   rows  96:112, cols 0:32  W3^T (16, 32)
#   rows 112:144: col 0 b1, col 1 b2, col 2 bf (= b3@Wd1 + bd1), col 3 wd2  (32,1 each)
#   rows 144:160: col 0 b3 (16, 1);  [144, 1] bd2 (scalar)
P_ROWS = 160
P_COLS = 128


def _density_network_kernel(p_ref, x_ref, density_ref, feat_ref):
    """Fused forward pass for one batch tile.

    p_ref       : (P_ROWS, 128) packed parameters (resident, fetched once)
    x_ref       : (TN, 4)       xyzt, row-major (exactly as the caller stores it)
    density_ref : (1, TN)       density, channel-major (lane-dense stores)
    feat_ref    : (TN, FEAT)    features, already row-major (no wrapper transpose)
    """
    x = x_ref[...]                                   # (TN, 4)

    w1t = p_ref[0:32, 0:4]                           # (32, 4)
    w2t = p_ref[32:64, 0:32]                         # (32, 32)
    wft = p_ref[64:96, 0:32]                         # (32, 32)
    w3t = p_ref[96:112, 0:32]                        # (16, 32)
    b1 = p_ref[112:144, 0:1]                         # (32, 1)
    b2 = p_ref[112:144, 1:2]                         # (32, 1)
    bf = p_ref[112:144, 2:3]                         # (32, 1)
    wd2 = p_ref[112:144, 3:4]                        # (32, 1)
    b3 = p_ref[144:160, 0:1]                         # (16, 1)
    bd2 = p_ref[144:145, 1:2]                        # (1, 1)

    # ---- feature_map(xyz, t) (bbox_model is None -> no masking) ------------------
    # Layer 1: contract the 4-channel axis of both operands (einsum 'kc,nc->kn') so
    # the row-major x block feeds the channel-major pipeline with no wrapper transpose.
    h = jax.lax.dot_general(w1t, x, (((1,), (1,)), ((), ())),
                            preferred_element_type=jnp.float32) + b1     # (32, TN)
    h = jnp.maximum(h, 0.0)
    h = jnp.maximum(jnp.dot(w2t, h, preferred_element_type=jnp.float32) + b2, 0.0)

    # Feature head: compute channel-major (lane-dense MXU/VPU work), transpose on the
    # XLU so the stored block is already row-major (N, FEAT).
    feat_cm = jnp.dot(w3t, h, preferred_element_type=jnp.float32) + b3   # (16, TN)
    feat_ref[...] = feat_cm.T                                            # (TN, FEAT)

    # ---- density_map(features), fused through h (Wf = W3 @ Wd1 precomputed) ------
    hd = jnp.maximum(jnp.dot(wft, h, preferred_element_type=jnp.float32) + bf, 0.0)
    # Final (H -> 1) layer as broadcast-multiply + sublane reduce (lane-dense output).
    density_ref[...] = jnp.sum(wd2 * hd, axis=0, keepdims=True) + bd2    # (1, TN)


def init_params(key):
    """Deterministic parameter init (raw, row-major shapes as in the PyTorch MLPs)."""
    keys = jax.random.split(key, 5)

    def dense(k, fan_in, fan_out):
        scale = 1.0 / jnp.sqrt(jnp.float32(fan_in))
        w = jax.random.uniform(k, (fan_in, fan_out), jnp.float32, -scale, scale)
        b = jax.random.uniform(jax.random.fold_in(k, 1), (1, fan_out),
                               jnp.float32, -scale, scale)
        return w, b

    w1, b1 = dense(keys[0], 4, HIDDEN)        # feature_map layer 1
    w2, b2 = dense(keys[1], HIDDEN, HIDDEN)   # feature_map layer 2
    w3, b3 = dense(keys[2], HIDDEN, FEAT)     # feature_map output
    wd1, bd1 = dense(keys[3], FEAT, HIDDEN)   # density_map layer 1
    wd2, bd2 = dense(keys[4], HIDDEN, 1)      # density_map output
    return (w1, b1, w2, b2, w3, b3, wd1, bd1, wd2, bd2)


def pack_params(params):
    """Pack the 10 small parameter arrays into one (P_ROWS, 128) f32 slab.

    Also pre-fuses the density branch's first layer with the feature head:
      hd = relu(features @ Wd1 + bd1) = relu(h2 @ (W3 @ Wd1) + (b3 @ Wd1 + bd1)).
    """
    (w1, b1, w2, b2, w3, b3, wd1, bd1, wd2, bd2) = params
    wf = w3 @ wd1                     # (HIDDEN, HIDDEN)
    bf = b3 @ wd1 + bd1               # (1, HIDDEN)

    slab = jnp.zeros((P_ROWS, P_COLS), jnp.float32)
    slab = slab.at[0:32, 0:4].set(w1.T)
    slab = slab.at[32:64, 0:32].set(w2.T)
    slab = slab.at[64:96, 0:32].set(wf.T)
    slab = slab.at[96:112, 0:32].set(w3.T)
    slab = slab.at[112:144, 0:1].set(b1.reshape(-1, 1))
    slab = slab.at[112:144, 1:2].set(b2.reshape(-1, 1))
    slab = slab.at[112:144, 2:3].set(bf.reshape(-1, 1))
    slab = slab.at[112:144, 3:4].set(wd2.reshape(-1, 1))
    slab = slab.at[144:160, 0:1].set(b3.reshape(-1, 1))
    slab = slab.at[144:145, 1:2].set(bd2.reshape(1, 1))
    return slab


def _round_up(x, m):
    return ((x + m - 1) // m) * m


def _pick_tile(n, requested):
    """Pick a 128-aligned batch tile.

    Preferences:
      (a) tiles that divide n exactly  -> no input pad and no output-slice copies,
      (b) >= 2 grid steps              -> the "parallel" axis splits across v7x's 2 TCs,
      (c) large tiles                  -> amortize the ~0.35 us per-grid-step overhead.
    """
    requested = max(128, min(_round_up(int(requested), 128), 16384))
    if n <= 128:
        return 128
    if n % 128 == 0:
        blocks = n // 128
        req_blocks = requested // 128
        divs = [d for d in range(1, min(blocks, req_blocks) + 1) if blocks % d == 0]
        multi = [d for d in divs if blocks // d >= 2]
        best = (max(multi) if multi else max(divs)) * 128
        # Only take the exact-divisor route if the tile is still reasonably large.
        if best >= min(requested, 2048) or best >= n // 2:
            return best
    # Fall back: pad the batch up to a multiple of the tile (>= 2 steps when possible).
    half = _round_up(-(-n // 2), 128)
    return max(128, min(requested, half))


def density_network_forward(xyzt, params, *, tile_n=8192):
    """Returns (density, features), matching DensityNetwork.forward's return order."""
    N, C = xyzt.shape
    assert C == 4

    tile = _pick_tile(N, tile_n)
    n_pad = _round_up(N, tile)
    num_tiles = n_pad // tile

    x = xyzt.astype(jnp.float32)
    if n_pad != N:
        x = jnp.pad(x, ((0, n_pad - N), (0, 0)))     # only copies when the tile does not divide N

    p_slab = pack_params(params)                      # (P_ROWS, 128)

    flops = 2 * n_pad * HIDDEN * (4 + HIDDEN + HIDDEN + FEAT + 1)
    bytes_accessed = n_pad * 4 * (4 + FEAT + 1) + P_ROWS * P_COLS * 4
    # Footprint: double-buffered (tile,4) + (tile,16) + (1,tile) blocks are lane-padded
    # in VMEM (~1 KiB/row) plus Mosaic value temporaries; leave generous headroom but
    # stay well under v7x's 64 MiB physical VMEM at the default tile (48 MiB @ 8192).
    vmem_limit = int(min(112 * 1024 * 1024, 16 * 1024 * 1024 + 4096 * tile))

    density_cm, feat_bm = pl.pallas_call(
        _density_network_kernel,
        out_shape=(
            jax.ShapeDtypeStruct((1, n_pad), jnp.float32),      # density (channel-major)
            jax.ShapeDtypeStruct((n_pad, FEAT), jnp.float32),   # features (row-major)
        ),
        grid_spec=pltpu.PrefetchScalarGridSpec(
            num_scalar_prefetch=0,
            grid=(num_tiles,),
            in_specs=[
                pl.BlockSpec((P_ROWS, P_COLS), lambda i: (0, 0)),  # resident params
                pl.BlockSpec((tile, 4), lambda i: (i, 0)),         # streamed xyzt (row-major)
            ],
            out_specs=[
                pl.BlockSpec((1, tile), lambda i: (0, i)),
                pl.BlockSpec((tile, FEAT), lambda i: (i, 0)),
            ],
        ),
        compiler_params=pltpu.CompilerParams(
            dimension_semantics=("parallel",),
            vmem_limit_bytes=vmem_limit,
        ),
        cost_estimate=pl.CostEstimate(
            flops=flops, bytes_accessed=bytes_accessed, transcendentals=0),
    )(p_slab, x)

    # (1, n_pad) and (n_pad, 1) are bit-identical: free reshape, no transpose.
    density = jnp.reshape(density_cm, (n_pad, 1))
    if n_pad != N:
        density = density[:N]
        feat_bm = feat_bm[:N]
    return density, feat_bm


def _reference_forward(xyzt, params):
    """Pure-JAX reference of the same forward pass (for correctness check)."""
    (w1, b1, w2, b2, w3, b3, wd1, bd1, wd2, bd2) = params
    h = jnp.maximum(xyzt @ w1 + b1, 0.0)
    h = jnp.maximum(h @ w2 + b2, 0.0)
    features = h @ w3 + b3
    hd = jnp.maximum(features @ wd1 + bd1, 0.0)
    density = hd @ wd2 + bd2
    return density, features


# TODO(synk): density_with_jacobian (autograd minibatch Jacobian) is not reproduced in the
# kernel; only the forward pass (density, features) is implemented.
# TODO(synk): bbox_model masking is a no-op here (bbox_model=None in this instantiation).

if __name__ == "__main__":
    key = jax.random.PRNGKey(0)
    k_params, k_x = jax.random.split(key)

    params = init_params(k_params)

    N = 1000  # deliberately not a multiple of the tile to exercise the padded path
    xyzt = jax.random.uniform(k_x, (N, 4), jnp.float32, -1.0, 1.0)

    d_ref, f_ref = _reference_forward(xyzt, params)

    # Default path: adaptive tile (512 here) -> 2 grid steps, padded tail.
    density, features = density_network_forward(xyzt, params)
    jax.block_until_ready((density, features))
    assert density.shape == (N, 1) and features.shape == (N, FEAT)
    assert jnp.allclose(density, d_ref, atol=1e-4, rtol=1e-4)
    assert jnp.allclose(features, f_ref, atol=1e-4, rtol=1e-4)

    # Small explicit tile: multi-step grid (4 steps) + tail padding path.
    density2, features2 = density_network_forward(xyzt, params, tile_n=256)
    jax.block_until_ready((density2, features2))
    assert jnp.allclose(density2, d_ref, atol=1e-4, rtol=1e-4)
    assert jnp.allclose(features2, f_ref, atol=1e-4, rtol=1e-4)

    # Divisible batch: zero-copy wrapper path (no pad, no output slices).
    N3 = 1024
    xyzt3 = jax.random.uniform(jax.random.fold_in(k_x, 3), (N3, 4), jnp.float32, -1.0, 1.0)
    d3_ref, f3_ref = _reference_forward(xyzt3, params)
    density3, features3 = density_network_forward(xyzt3, params)
    jax.block_until_ready((density3, features3))
    assert jnp.allclose(density3, d3_ref, atol=1e-4, rtol=1e-4)
    assert jnp.allclose(features3, f3_ref, atol=1e-4, rtol=1e-4)

    print("KERNEL_OK")
</pallas_src>

<mosaic_0001>
module attributes {stable_mosaic.version = 11 : i64} {
  func.func @_density_network_kernel(%arg0: i32, %arg1: memref<160x128xf32, #tpu.memory_space<vmem>>, %arg2: memref<512x4xf32, #tpu.memory_space<vmem>>, %arg3: memref<1x512xf32, #tpu.memory_space<vmem>>, %arg4: memref<512x16xf32, #tpu.memory_space<vmem>>) attributes {dimension_semantics = [#tpu.dimension_semantics<parallel>], iteration_bounds = array<i64: 2>, scalar_prefetch = 0 : i64, scratch_operands = 0 : i64, tpu.core_type = #tpu.core_type<tc>, window_params = [{pipeline_mode = #tpu.pipeline_mode<synchronous>, transform_indices = @transform_0, window_bounds = array<i64: 160, 128>}, {transform_indices = @transform_1, window_bounds = array<i64: 512, 4>}, {transform_indices = @transform_2, window_bounds = array<i64: 1, 512>}, {transform_indices = @transform_3, window_bounds = array<i64: 512, 16>}]} {
    %c0 = arith.constant 0 : index
    %c0_0 = arith.constant 0 : index
    %0 = vector.load %arg2[%c0, %c0_0] : memref<512x4xf32, #tpu.memory_space<vmem>>, vector<512x4xf32>
    %c0_1 = arith.constant 0 : index
    %c0_2 = arith.constant 0 : index
    %1 = vector.load %arg1[%c0_1, %c0_2] : memref<160x128xf32, #tpu.memory_space<vmem>>, vector<32x4xf32>
    %c32 = arith.constant 32 : index
    %c0_3 = arith.constant 0 : index
    %2 = vector.load %arg1[%c32, %c0_3] : memref<160x128xf32, #tpu.memory_space<vmem>>, vector<32x32xf32>
    %c64 = arith.constant 64 : index
    %c0_4 = arith.constant 0 : index
    %3 = vector.load %arg1[%c64, %c0_4] : memref<160x128xf32, #tpu.memory_space<vmem>>, vector<32x32xf32>
    %c96 = arith.constant 96 : index
    %c0_5 = arith.constant 0 : index
    %4 = vector.load %arg1[%c96, %c0_5] : memref<160x128xf32, #tpu.memory_space<vmem>>, vector<16x32xf32>
    %c112 = arith.constant 112 : index
    %c0_6 = arith.constant 0 : index
    %5 = vector.load %arg1[%c112, %c0_6] : memref<160x128xf32, #tpu.memory_space<vmem>>, vector<32x1xf32>
    %c112_7 = arith.constant 112 : index
    %c1 = arith.constant 1 : index
    %6 = vector.load %arg1[%c112_7, %c1] : memref<160x128xf32, #tpu.memory_space<vmem>>, vector<32x1xf32>
    %c112_8 = arith.constant 112 : index
    %c2 = arith.constant 2 : index
    %7 = vector.load %arg1[%c112_8, %c2] : memref<160x128xf32, #tpu.memory_space<vmem>>, vector<32x1xf32>
    %c112_9 = arith.constant 112 : index
    %c3 = arith.constant 3 : index
    %8 = vector.load %arg1[%c112_9, %c3] : memref<160x128xf32, #tpu.memory_space<vmem>>, vector<32x1xf32>
    %c144 = arith.constant 144 : index
    %c0_10 = arith.constant 0 : index
    %9 = vector.load %arg1[%c144, %c0_10] : memref<160x128xf32, #tpu.memory_space<vmem>>, vector<16x1xf32>
    %c144_11 = arith.constant 144 : index
    %c1_12 = arith.constant 1 : index
    %10 = vector.load %arg1[%c144_11, %c1_12] : memref<160x128xf32, #tpu.memory_space<vmem>>, vector<1x1xf32>
    %cst = arith.constant dense<0.000000e+00> : vector<32x512xf32>
    %11 = tpu.matmul %1, %0, %cst {dimension_numbers = #tpu.dot_dimension_numbers<[1], [1], [0], [0], [0, 0, 1, 0], [], []>} : vector<32x4xf32>, vector<512x4xf32>, vector<32x512xf32> -> vector<32x512xf32>
    %12 = vector.broadcast %5 : vector<32x1xf32> to vector<32x512xf32>
    %13 = arith.addf %11, %12 : vector<32x512xf32>
    %cst_13 = arith.constant 0.000000e+00 : f32
    %14 = vector.broadcast %cst_13 : f32 to vector<32x512xf32>
    %15 = arith.maximumf %13, %14 : vector<32x512xf32>
    %cst_14 = arith.constant dense<0.000000e+00> : vector<32x512xf32>
    %16 = tpu.matmul %2, %15, %cst_14 {dimension_numbers = #tpu.dot_dimension_numbers<[1], [0], [0], [1], [0, 0, 1, 1], [], []>} : vector<32x32xf32>, vector<32x512xf32>, vector<32x512xf32> -> vector<32x512xf32>
    %17 = vector.broadcast %6 : vector<32x1xf32> to vector<32x512xf32>
    %18 = arith.addf %16, %17 : vector<32x512xf32>
    %cst_15 = arith.constant 0.000000e+00 : f32
    %19 = vector.broadcast %cst_15 : f32 to vector<32x512xf32>
    %20 = arith.maximumf %18, %19 : vector<32x512xf32>
    %cst_16 = arith.constant dense<0.000000e+00> : vector<16x512xf32>
    %21 = tpu.matmul %4, %20, %cst_16 {dimension_numbers = #tpu.dot_dimension_numbers<[1], [0], [0], [1], [0, 0, 1, 1], [], []>} : vector<16x32xf32>, vector<32x512xf32>, vector<16x512xf32> -> vector<16x512xf32>
    %22 = vector.broadcast %9 : vector<16x1xf32> to vector<16x512xf32>
    %23 = arith.addf %21, %22 : vector<16x512xf32>
    %24 = tpu.transpose %23, [1, 0] : vector<16x512xf32> -> vector<512x16xf32>
    %c0_17 = arith.constant 0 : index
    %c0_18 = arith.constant 0 : index
    %25 = vector.load %arg4[%c0_17, %c0_18] : memref<512x16xf32, #tpu.memory_space<vmem>>, vector<512x16xf32>
    tpu.vector_store %arg4[%c0_17, %c0_18], %24 {strides = array<i32>} : memref<512x16xf32, #tpu.memory_space<vmem>>, vector<512x16xf32>,
    %cst_19 = arith.constant dense<0.000000e+00> : vector<32x512xf32>
    %26 = tpu.matmul %3, %20, %cst_19 {dimension_numbers = #tpu.dot_dimension_numbers<[1], [0], [0], [1], [0, 0, 1, 1], [], []>} : vector<32x32xf32>, vector<32x512xf32>, vector<32x512xf32> -> vector<32x512xf32>
    %27 = vector.broadcast %7 : vector<32x1xf32> to vector<32x512xf32>
    %28 = arith.addf %26, %27 : vector<32x512xf32>
    %cst_20 = arith.constant 0.000000e+00 : f32
    %29 = vector.broadcast %cst_20 : f32 to vector<32x512xf32>
    %30 = arith.maximumf %28, %29 : vector<32x512xf32>
    %31 = vector.broadcast %8 : vector<32x1xf32> to vector<32x512xf32>
    %32 = arith.mulf %31, %30 : vector<32x512xf32>
    %cst_21 = arith.constant dense<0.000000e+00> : vector<512xf32>
    %33 = vector.multi_reduction <add>, %32, %cst_21 [0] : vector<32x512xf32> to vector<512xf32>
    %34 = vector.shape_cast %33 : vector<512xf32> to vector<1x512xf32>
    %35 = vector.broadcast %10 : vector<1x1xf32> to vector<1x512xf32>
    %36 = arith.addf %34, %35 : vector<1x512xf32>
    %c0_22 = arith.constant 0 : index
    %c0_23 = arith.constant 0 : index
    %37 = vector.load %arg3[%c0_22, %c0_23] : memref<1x512xf32, #tpu.memory_space<vmem>>, vector<1x512xf32>
    tpu.vector_store %arg3[%c0_22, %c0_23], %36 {strides = array<i32>} : memref<1x512xf32, #tpu.memory_space<vmem>>, vector<1x512xf32>,
    return
  }
  func.func @transform_0(%arg0: i32) -> (i32, i32) {
    %c0_i32 = arith.constant 0 : i32
    %c0_i32_0 = arith.constant 0 : i32
    %c0_i32_1 = arith.constant 0 : i32
    return %c0_i32, %c0_i32_0 : i32, i32
  }
  func.func @transform_1(%arg0: i32) -> (i32, i32) {
    %c0_i32 = arith.constant 0 : i32
    %c0_i32_0 = arith.constant 0 : i32
    return %arg0, %c0_i32 : i32, i32
  }
  func.func @transform_2(%arg0: i32) -> (i32, i32) {
    %c0_i32 = arith.constant 0 : i32
    %c0_i32_0 = arith.constant 0 : i32
    return %c0_i32, %arg0 : i32, i32
  }
  func.func @transform_3(%arg0: i32) -> (i32, i32) {
    %c0_i32 = arith.constant 0 : i32
    %c0_i32_0 = arith.constant 0 : i32
    return %arg0, %c0_i32 : i32, i32
  }
}

</mosaic_0001>

<llo_original>
// kernel: tpu_custom_call.1
$region0: #{tpu_custom_call.1}
  #allocation0 [shape = 'u32[]', space=smem, size = 0x4, offset = 0x4, fixed_abs, tag = 'smem constant byte address 0x4 - core index']
  #allocation1 [shape = 'u32[144,128]{1,0:T(1,128)}', space=vmem, size = 0x12000, scoped, tag = 'internal scratch']
  %s0 = inlined_call_operand.vmem [shape: f32[160,128], index: 0, kind: input, shape index: {}]
  %s1 = inlined_call_operand.vmem [shape: f32[1024,4], index: 1, kind: input, shape index: {}]
  %s2 = inlined_call_operand.hbm [shape: f32[1,1024], index: 2, kind: output, shape index: {0}]
  %s3 = inlined_call_operand.vmem [shape: f32[1024,16], index: 3, kind: output, shape index: {1}]
  %4 = xla_tuple %s2, %s3
  %s5 = sld [smem:[#allocation0]]
  $region49: #{tpu_custom_call.1} parent=0
    _
  %s7 = ssub.s32 1, %s5
  %s8 = scalar_select 0, %s7, %s5
  $region1: #{tpu_custom_call.1} parent=0
    #allocation2 [shape = 'u8[4096]{0}', space=vmem, size = 0x1000, scoped, tag = 'output window, operand 0']
    #allocation3 [shape = 's32[2]{0}', space=sflag, size = 0x8, scoped, tag = 'scoped memory for tpu_custom_call.1']
    %9 = vsyncpa [#allocation3], 0
    %s10 = scalar_lea.sflag [#allocation3], 1
    %11 = vsyncpa %s10, 0
    loop: start=0, step=1, limit=4
    $region2: #{tpu_custom_call.1} parent=1 // loop_pre_header
      _
    $region3: #{tpu_custom_call.1} parent=1 // loop_header
      %s13 = sphi 0, %s17
      %p14 = scmp.ge.s32.totalorder %s13, 4
      %s21 = sphi 0, %s21
      %s23 = sphi 0, %s21
      %s24 = sphi 0, %s23
      %s38 = sphi 0, %s24
      %s44 = sphi 0, %s46
      %s47 = sphi 0, %s44
      %s48 = sphi 0, %s47
      %s64 = sphi 0, %s48
      %s70 = sphi 0, %s72
      %s73 = sphi 0, %s70
      %s74 = sphi 0, %s73
      %s90 = sphi 0, %s74
      %s96 = sphi 0, %s98
      %s99 = sphi 0, %s96
      %s100 = sphi 0, %s99
      %s116 = sphi 0, %s100
    $region4: #{tpu_custom_call.1} parent=1 // loop_header_branch
      %16 = sbr.rel (%p14) target = $region8
    $region5: #{tpu_custom_call.1} parent=1 // loop_body
      %s18 = ssub.s32 %s13, 1
      %s19 = ssub.s32 %s13, 2
      %s20 = sadd.s32 %s13, 1
      %s22 = sadd.s32 %s21, 1
      %p25 = scmp.eq.s32.totalorder %s13, 1
      %p26 = scmp.ne.s32.totalorder %s21, %s23
      %p27 = scmp.eq.s32.totalorder %s13, 0
      %p28 = por %p26, %p27
      %p29 = scmp.ne.s32.totalorder %s21, %s23
      %p30 = scmp.eq.s32.totalorder %s18, 1
      %p31 = por %p29, %p30
      %p32 = scmp.ne.s32.totalorder %s23, %s24
      %p33 = scmp.eq.s32.totalorder %s18, 0
      %p34 = por %p32, %p33
      %p35 = scmp.ne.s32.totalorder %s23, %s24
      %p36 = scmp.eq.s32.totalorder %s19, 1
      %p37 = por %p35, %p36
      %p39 = scmp.ne.s32.totalorder %s24, %s38
      %p40 = scmp.eq.s32.totalorder %s19, 0
      %p41 = por %p39, %p40
      %s42 = ssub.s32 %s13, %s20
      %p43 = scmp.eq.s32.totalorder %s42, 0
      %s45 = sadd.s32 %s44, 1
      %s46 = scalar_select %p43, %s44, %s45
      %p49 = pneg %p43
      %p50 = scmp.eq.s32.totalorder %s13, 1
      %p51 = por %p49, %p50
      %p52 = scmp.ne.s32.totalorder %s44, %s47
      %p53 = scmp.eq.s32.totalorder %s13, 0
      %p54 = por %p52, %p53
      %p55 = scmp.ne.s32.totalorder %s44, %s47
      %p56 = scmp.eq.s32.totalorder %s18, 1
      %p57 = por %p55, %p56
      %p58 = scmp.ne.s32.totalorder %s47, %s48
      %p59 = scmp.eq.s32.totalorder %s18, 0
      %p60 = por %p58, %p59
      %p61 = scmp.ne.s32.totalorder %s47, %s48
      %p62 = scmp.eq.s32.totalorder %s19, 1
      %p63 = por %p61, %p62
      %p65 = scmp.ne.s32.totalorder %s48, %s64
      %p66 = scmp.eq.s32.totalorder %s19, 0
      %p67 = por %p65, %p66
      %s68 = ssub.s32 %s13, %s20
      %p69 = scmp.eq.s32.totalorder %s68, 0
      %s71 = sadd.s32 %s70, 1
      %s72 = scalar_select %p69, %s70, %s71
      %p75 = pneg %p69
      %p76 = scmp.eq.s32.totalorder %s13, 1
      %p77 = por %p75, %p76
      %p78 = scmp.ne.s32.totalorder %s70, %s73
      %p79 = scmp.eq.s32.totalorder %s13, 0
      %p80 = por %p78, %p79
      %p81 = scmp.ne.s32.totalorder %s70, %s73
      %p82 = scmp.eq.s32.totalorder %s18, 1
      %p83 = por %p81, %p82
      %p84 = scmp.ne.s32.totalorder %s73, %s74
      %p85 = scmp.eq.s32.totalorder %s18, 0
      %p86 = por %p84, %p85
      %p87 = scmp.ne.s32.totalorder %s73, %s74
      %p88 = scmp.eq.s32.totalorder %s19, 1
      %p89 = por %p87, %p88
      %p91 = scmp.ne.s32.totalorder %s74, %s90
      %p92 = scmp.eq.s32.totalorder %s19, 0
      %p93 = por %p91, %p92
      %s94 = ssub.s32 %s13, %s20
      %p95 = scmp.eq.s32.totalorder %s94, 0
      %s97 = sadd.s32 %s96, 1
      %s98 = scalar_select %p95, %s96, %s97
      %p101 = pneg %p95
      %p102 = scmp.eq.s32.totalorder %s13, 1
      %p103 = por %p101, %p102
      %p104 = scmp.ne.s32.totalorder %s96, %s99
      %p105 = scmp.eq.s32.totalorder %s13, 0
      %p106 = por %p104, %p105
      %p107 = scmp.ne.s32.totalorder %s96, %s99
      %p108 = scmp.eq.s32.totalorder %s18, 1
      %p109 = por %p107, %p108
      %p110 = scmp.ne.s32.totalorder %s99, %s100
      %p111 = scmp.eq.s32.totalorder %s18, 0
      %p112 = por %p110, %p111
      %p113 = scmp.ne.s32.totalorder %s99, %s100
      %p114 = scmp.eq.s32.totalorder %s19, 1
      %p115 = por %p113, %p114
      %p117 = scmp.ne.s32.totalorder %s100, %s116
      %p118 = scmp.eq.s32.totalorder %s19, 0
      %p119 = por %p117, %p118
      %p120 = scmp.le.s32.totalorder 1, %s13
      %p121 = scmp.lt.s32.totalorder %s13, 3
      %p122 = pnand %p120, %p121
      %p123 = pneg %p122
      // Predicated region
      $region9: #{tpu_custom_call.1} parent=5 // pred_check
        _
      $region10: #{tpu_custom_call.1} parent=5 // pred_check_branch
        %125 = sbr.rel (%p122) target = $region12
      $region11: #{tpu_custom_call.1} parent=5 // pred_region
        %s126 = ssub.s32 %s13, 1
        // Predicated region
        $region13: #{tpu_custom_call.1} parent=11 // pred_check
          %p127 = pneg %p34
        $region14: #{tpu_custom_call.1} parent=11 // pred_check_branch
          %129 = sbr.rel (%p127) target = $region16
        $region15: #{tpu_custom_call.1} parent=11 // pred_region
          _
        $region16: #{tpu_custom_call.1} parent=11 // pred_fallthru
          _
      $region12: #{tpu_custom_call.1} parent=5 // pred_fallthru
        _
      %p130 = scmp.lt.s32.totalorder %s13, 2
      // Predicated region
      $region17: #{tpu_custom_call.1} parent=5 // pred_check
        %p131 = pneg %p130
      $region18: #{tpu_custom_call.1} parent=5 // pred_check_branch
        %133 = sbr.rel (%p131) target = $region20
      $region19: #{tpu_custom_call.1} parent=5 // pred_region
        // Predicated region
        $region21: #{tpu_custom_call.1} parent=19 // pred_check
          %p134 = pneg %p54
        $region22: #{tpu_custom_call.1} parent=19 // pred_check_branch
          %136 = sbr.rel (%p134) target = $region24
        $region23: #{tpu_custom_call.1} parent=19 // pred_region
          %s137 = smul.u32 64, %s13
          %p138 = scmp.lt.s32.totalorder %s137, 127
          %s139 = scalar_select %p138, %s137, 127
          %s140 = smul.addr %s139, 8
          %s141 = scalar_lea.vmem %s1, %s140
          %s142 = smul.u32 64, %s13
        $region24: #{tpu_custom_call.1} parent=19 // pred_fallthru
          _
      $region20: #{tpu_custom_call.1} parent=5 // pred_fallthru
        _
      %p143 = scmp.le.s32.totalorder 1, %s13
      %p144 = scmp.lt.s32.totalorder %s13, 3
      %p145 = pnand %p143, %p144
      %p146 = pneg %p145
      // Predicated region
      $region25: #{tpu_custom_call.1} parent=5 // pred_check
        _
      $region26: #{tpu_custom_call.1} parent=5 // pred_check_branch
        %148 = sbr.rel (%p145) target = $region28
      $region27: #{tpu_custom_call.1} parent=5 // pred_region
        %s149 = ssub.s32 %s13, 1
        %p150 = pneg %p34
        %p151 = pneg %p31
        %s152 = smul.u32 64, %s18
        %p153 = scmp.lt.s32.totalorder %s152, 127
        %s154 = scalar_select %p153, %s152, 127
        %s155 = smul.addr %s154, 8
        %s156 = scalar_lea.vmem %s1, %s155
        %p157 = pneg %p60
        %p158 = pneg %p57
        %p159 = pneg %p86
        %p160 = pneg %p83
        %s161 = sand.u32 %s73, 1
        %s162 = scalar_lea.sflag [#allocation3], %s161
        %s163 = sand.u32 %s73, 1
        %s164 = smul.addr %s163, 4
        %s165 = scalar_lea.vmem [#allocation2], %s164
        %p166 = pneg %p112
        %p167 = pneg %p109
        %s168 = smul.u32 64, %s18
        %p169 = scmp.lt.s32.totalorder %s168, 127
        %s170 = scalar_select %p169, %s168, 127
        %s171 = smul.addr %s170, 8
        %s172 = scalar_lea.vmem %s3, %s171
        %s173 = smul.u32 64, %s18
        %p174 = scmp.lt.s32.totalorder %s173, 127
        %s175 = scalar_select %p174, %s173, 127
        %s176 = smul.addr %s175, 8
        %s177 = scalar_lea.vmem %s1, %s176
        %s178 = smul.u32 64, %s18
        %s179 = smul.u32 4, %s18
        %s180 = smul.u32 64, %s18
        %p181 = scmp.lt.s32.totalorder %s180, 127
        %s182 = scalar_select %p181, %s180, 127
        %s183 = smul.addr %s182, 8
        %s184 = scalar_lea.vmem %s3, %s183
        %s185 = smul.u32 64, %s18
        %v186 = vld [vmem:[%s177] sm:$0xff]
        %v187 = vld [vmem:[%s177 + $0x8] sm:$0xff]
        %v188 = vld [vmem:[%s177 + $0x10] sm:$0xff]
        %v189 = vld [vmem:[%s177 + $0x18] sm:$0xff]
        %v190 = vld [vmem:[%s177 + $0x20] sm:$0xff]
        %v191 = vld [vmem:[%s177 + $0x28] sm:$0xff]
        %v192 = vld [vmem:[%s177 + $0x30] sm:$0xff]
        %v193 = vld [vmem:[%s177 + $0x38] sm:$0xff]
        %v194 = vld [vmem:[%s177 + $0x40] sm:$0xff]
        %v195 = vld [vmem:[%s177 + $0x48] sm:$0xff]
        %v196 = vld [vmem:[%s177 + $0x50] sm:$0xff]
        %v197 = vld [vmem:[%s177 + $0x58] sm:$0xff]
        %v198 = vld [vmem:[%s177 + $0x60] sm:$0xff]
        %v199 = vld [vmem:[%s177 + $0x68] sm:$0xff]
        %v200 = vld [vmem:[%s177 + $0x70] sm:$0xff]
        %v201 = vld [vmem:[%s177 + $0x78] sm:$0xff]
        %v202 = vld [vmem:[%s177 + $0x80] sm:$0xff]
        %v203 = vld [vmem:[%s177 + $0x88] sm:$0xff]
        %v204 = vld [vmem:[%s177 + $0x90] sm:$0xff]
        %v205 = vld [vmem:[%s177 + $0x98] sm:$0xff]
        %v206 = vld [vmem:[%s177 + $0xa0] sm:$0xff]
        %v207 = vld [vmem:[%s177 + $0xa8] sm:$0xff]
        %v208 = vld [vmem:[%s177 + $0xb0] sm:$0xff]
        %v209 = vld [vmem:[%s177 + $0xb8] sm:$0xff]
        %v210 = vld [vmem:[%s177 + $0xc0] sm:$0xff]
        %v211 = vld [vmem:[%s177 + $0xc8] sm:$0xff]
        %v212 = vld [vmem:[%s177 + $0xd0] sm:$0xff]
        %v213 = vld [vmem:[%s177 + $0xd8] sm:$0xff]
        %v214 = vld [vmem:[%s177 + $0xe0] sm:$0xff]
        %v215 = vld [vmem:[%s177 + $0xe8] sm:$0xff]
        %v216 = vld [vmem:[%s177 + $0xf0] sm:$0xff]
        %v217 = vld [vmem:[%s177 + $0xf8] sm:$0xff]
        %v218 = vld [vmem:[%s177 + $0x100] sm:$0xff]
        %v219 = vld [vmem:[%s177 + $0x108] sm:$0xff]
        %v220 = vld [vmem:[%s177 + $0x110] sm:$0xff]
        %v221 = vld [vmem:[%s177 + $0x118] sm:$0xff]
        %v222 = vld [vmem:[%s177 + $0x120] sm:$0xff]
        %v223 = vld [vmem:[%s177 + $0x128] sm:$0xff]
        %v224 = vld [vmem:[%s177 + $0x130] sm:$0xff]
        %v225 = vld [vmem:[%s177 + $0x138] sm:$0xff]
        %v226 = vld [vmem:[%s177 + $0x140] sm:$0xff]
        %v227 = vld [vmem:[%s177 + $0x148] sm:$0xff]
        %v228 = vld [vmem:[%s177 + $0x150] sm:$0xff]
        %v229 = vld [vmem:[%s177 + $0x158] sm:$0xff]
        %v230 = vld [vmem:[%s177 + $0x160] sm:$0xff]
        %v231 = vld [vmem:[%s177 + $0x168] sm:$0xff]
        %v232 = vld [vmem:[%s177 + $0x170] sm:$0xff]
        %v233 = vld [vmem:[%s177 + $0x178] sm:$0xff]
        %v234 = vld [vmem:[%s177 + $0x180] sm:$0xff]
        %v235 = vld [vmem:[%s177 + $0x188] sm:$0xff]
        %v236 = vld [vmem:[%s177 + $0x190] sm:$0xff]
        %v237 = vld [vmem:[%s177 + $0x198] sm:$0xff]
        %v238 = vld [vmem:[%s177 + $0x1a0] sm:$0xff]
        %v239 = vld [vmem:[%s177 + $0x1a8] sm:$0xff]
        %v240 = vld [vmem:[%s177 + $0x1b0] sm:$0xff]
        %v241 = vld [vmem:[%s177 + $0x1b8] sm:$0xff]
        %v242 = vld [vmem:[%s177 + $0x1c0] sm:$0xff]
        %v243 = vld [vmem:[%s177 + $0x1c8] sm:$0xff]
        %v244 = vld [vmem:[%s177 + $0x1d0] sm:$0xff]
        %v245 = vld [vmem:[%s177 + $0x1d8] sm:$0xff]
        %v246 = vld [vmem:[%s177 + $0x1e0] sm:$0xff]
        %v247 = vld [vmem:[%s177 + $0x1e8] sm:$0xff]
        %v248 = vld [vmem:[%s177 + $0x1f0] sm:$0xff]
        %v249 = vld [vmem:[%s177 + $0x1f8] sm:$0xff]
        %v250 = vld [vmem:[%s0] sm:$0xff]
        %v251 = vld [vmem:[%s0 + $0x8] sm:$0xff]
        %v252 = vld [vmem:[%s0 + $0x10] sm:$0xff]
        %v253 = vld [vmem:[%s0 + $0x18] sm:$0xff]
        %v254 = vld [vmem:[%s0 + $0x20] sm:$0xff]
        %v255 = vld [vmem:[%s0 + $0x28] sm:$0xff]
        %v256 = vld [vmem:[%s0 + $0x30] sm:$0xff]
        %v257 = vld [vmem:[%s0 + $0x38] sm:$0xff]
        %v258 = vld [vmem:[%s0 + $0x40] sm:$0xff]
        %v259 = vld [vmem:[%s0 + $0x48] sm:$0xff]
        %v260 = vld [vmem:[%s0 + $0x50] sm:$0xff]
        %v261 = vld [vmem:[%s0 + $0x58] sm:$0xff]
        %v262 = vld [vmem:[%s0 + $0x60] sm:$0xff]
        %v263 = vld [vmem:[%s0 + $0x68] sm:$0xff]
        %v264 = vld [vmem:[%s0 + $0x70] sm:$0xff]
        %v265 = vld [vmem:[%s0 + $0x78] sm:$0xff]
        %v266 = vld [vmem:[%s0 + $0x80] sm:$0xff]
        %v267 = vld [vmem:[%s0 + $0x88] sm:$0xff]
        %v268 = vld [vmem:[%s0 + $0x90] sm:$0xff]
        %v269 = vld [vmem:[%s0 + $0x98] sm:$0xff]
        %v270 = vld [vmem:[%s0 + $0x90] sm:$0x1]
        %272 = vset.pattern.permute.xlu0 0
        %273 = vperm.xlu0 %272, %v264
        %v274 = vpop.permute.xlu0 %273
        %277 = vset.pattern.permute.xlu0 0
        %278 = vperm.xlu0 %277, %v265
        %v279 = vpop.permute.xlu0 %278
        %282 = vset.pattern.permute.xlu0 0
        %283 = vperm.xlu0 %282, %v266
        %v284 = vpop.permute.xlu0 %283
        %287 = vset.pattern.permute.xlu0 0
        %288 = vperm.xlu0 %287, %v267
        %v289 = vpop.permute.xlu0 %288
        %vm291 = vcmask 31744
        %v293 = vsel %vm291, %v250, 0
        %v296 = vsel %vm291, %v251, 0
        %v299 = vsel %vm291, %v252, 0
        %v302 = vsel %vm291, %v253, 0
        %v305 = vsel %vm291, %v186, 0
        %v308 = vsel %vm291, %v187, 0
        %v311 = vsel %vm291, %v188, 0
        %v314 = vsel %vm291, %v189, 0
        %v317 = vsel %vm291, %v190, 0
        %v320 = vsel %vm291, %v191, 0
        %v323 = vsel %vm291, %v192, 0
        %v326 = vsel %vm291, %v193, 0
        %v329 = vsel %vm291, %v194, 0
        %v332 = vsel %vm291, %v195, 0
        %v335 = vsel %vm291, %v196, 0
        %v338 = vsel %vm291, %v197, 0
        %v341 = vsel %vm291, %v198, 0
        %v344 = vsel %vm291, %v199, 0
        %v347 = vsel %vm291, %v200, 0
        %v350 = vsel %vm291, %v201, 0
        %v353 = vsel %vm291, %v202, 0
        %v356 = vsel %vm291, %v203, 0
        %v359 = vsel %vm291, %v204, 0
        %v362 = vsel %vm291, %v205, 0
        %v365 = vsel %vm291, %v206, 0
        %v368 = vsel %vm291, %v207, 0
        %v371 = vsel %vm291, %v208, 0
        %v374 = vsel %vm291, %v209, 0
        %v377 = vsel %vm291, %v210, 0
        %v380 = vsel %vm291, %v211, 0
        %v383 = vsel %vm291, %v212, 0
        %v386 = vsel %vm291, %v213, 0
        %v389 = vsel %vm291, %v214, 0
        %v392 = vsel %vm291, %v215, 0
        %v395 = vsel %vm291, %v216, 0
        %v398 = vsel %vm291, %v217, 0
        %v401 = vsel %vm291, %v218, 0
        %v404 = vsel %vm291, %v219, 0
        %v407 = vsel %vm291, %v220, 0
        %v410 = vsel %vm291, %v221, 0
        %v413 = vsel %vm291, %v222, 0
        %v416 = vsel %vm291, %v223, 0
        %v419 = vsel %vm291, %v224, 0
        %v422 = vsel %vm291, %v225, 0
        %v425 = vsel %vm291, %v226, 0
        %v428 = vsel %vm291, %v227, 0
        %v431 = vsel %vm291, %v228, 0
        %v434 = vsel %vm291, %v229, 0
        %v437 = vsel %vm291, %v230, 0
        %v440 = vsel %vm291, %v231, 0
        %v443 = vsel %vm291, %v232, 0
        %v446 = vsel %vm291, %v233, 0
        %v449 = vsel %vm291, %v234, 0
        %v452 = vsel %vm291, %v235, 0
        %v455 = vsel %vm291, %v236, 0
        %v458 = vsel %vm291, %v237, 0
        %v461 = vsel %vm291, %v238, 0
        %v464 = vsel %vm291, %v239, 0
        %v467 = vsel %vm291, %v240, 0
        %v470 = vsel %vm291, %v241, 0
        %v473 = vsel %vm291, %v242, 0
        %v476 = vsel %vm291, %v243, 0
        %v479 = vsel %vm291, %v244, 0
        %v482 = vsel %vm291, %v245, 0
        %v485 = vsel %vm291, %v246, 0
        %v488 = vsel %vm291, %v247, 0
        %v491 = vsel %vm291, %v248, 0
        %v494 = vsel %vm291, %v249, 0
        %496 = vmatprep.subr.mxu0 0.0
        %497 = vmatpush1.xpose.msra.mxu0 %v305
        %498 = vmatprep.subr.mxu0 0.0
        %499 = vmatpush1.xpose.msra.mxu0 %v308
        %500 = vmatprep.subr.mxu0 0.0
        %501 = vmatpush1.xpose.msra.mxu0 %v311
        %502 = vmatprep.subr.mxu0 0.0
        %503 = vmatpush1.xpose.msra.mxu0 %v314
        %504 = vmatprep.subr.mxu0 0.0
        %505 = vmatpush1.xpose.msra.mxu0 %v317
        %506 = vmatprep.subr.mxu0 0.0
        %507 = vmatpush1.xpose.msra.mxu0 %v320
        %508 = vmatprep.subr.mxu0 0.0
        %509 = vmatpush1.xpose.msra.mxu0 %v323
        %510 = vmatprep.subr.mxu0 0.0
        %511 = vmatpush1.xpose.msra.mxu0 %v326
        %512 = vmatprep.subr.mxu0 0.0
        %513 = vmatpush1.xpose.msra.mxu0 %v329
        %514 = vmatprep.subr.mxu0 0.0
        %515 = vmatpush1.xpose.msra.mxu0 %v332
        %516 = vmatprep.subr.mxu0 0.0
        %517 = vmatpush1.xpose.msra.mxu0 %v335
        %518 = vmatprep.subr.mxu0 0.0
        %519 = vmatpush1.xpose.msra.mxu0 %v338
        %520 = vmatprep.subr.mxu0 0.0
        %521 = vmatpush1.xpose.msra.mxu0 %v341
        %522 = vmatprep.subr.mxu0 0.0
        %523 = vmatpush1.xpose.msra.mxu0 %v344
        %524 = vmatprep.subr.mxu0 0.0
        %525 = vmatpush1.xpose.msra.mxu0 %v347
        %526 = vmatprep.subr.mxu0 0.0
        %527 = vmatpush1.xpose.msra.mxu0 %v350
        %528 = vmatprep.subr.mxu0 0.0
        %529 = vmatpush1.xpose.msra.mxu0 %v353
        %530 = vmatprep.subr.mxu0 0.0
        %531 = vmatpush1.xpose.msra.mxu0 %v356
        %532 = vmatprep.subr.mxu0 0.0
        %533 = vmatpush1.xpose.msra.mxu0 %v359
        %534 = vmatprep.subr.mxu0 0.0
        %535 = vmatpush1.xpose.msra.mxu0 %v362
        %536 = vmatprep.subr.mxu0 0.0
        %537 = vmatpush1.xpose.msra.mxu0 %v365
        %538 = vmatprep.subr.mxu0 0.0
        %539 = vmatpush1.xpose.msra.mxu0 %v368
        %540 = vmatprep.subr.mxu0 0.0
        %541 = vmatpush1.xpose.msra.mxu0 %v371
        %542 = vmatprep.subr.mxu0 0.0
        %543 = vmatpush1.xpose.msra.mxu0 %v374
        %544 = vmatprep.subr.mxu0 0.0
        %545 = vmatpush1.xpose.msra.mxu0 %v377
        %546 = vmatprep.subr.mxu0 0.0
        %547 = vmatpush1.xpose.msra.mxu0 %v380
        %548 = vmatprep.subr.mxu0 0.0
        %549 = vmatpush1.xpose.msra.mxu0 %v383
        %550 = vmatprep.subr.mxu0 0.0
        %551 = vmatpush1.xpose.msra.mxu0 %v386
        %552 = vmatprep.subr.mxu0 0.0
        %553 = vmatpush1.xpose.msra.mxu0 %v389
        %554 = vmatprep.subr.mxu0 0.0
        %555 = vmatpush1.xpose.msra.mxu0 %v392
        %556 = vmatprep.subr.mxu0 0.0
        %557 = vmatpush1.xpose.msra.mxu0 %v395
        %558 = vmatprep.subr.mxu0 0.0
        %559 = vmatpush1.xpose.msra.mxu0 %v398
        %560 = vmatprep.mubr.f32.mxu0 0.0
        %561 = vmatmul.mubr.f32.gmra.mrb[0].mxu0 %v293
        %v562 = vpop.f32.mrb[0].mxu0
        %v563 = vadd.f32 %v274, %v562
        %v564 = vpop.f32.mrb[0].mxu0
        %v565 = vadd.f32 %v274, %v564
        %566 = vmatprep.mubr.f32.mxu0 0.0
        %567 = vmatmul.mubr.f32.gmra.mrb[0].mxu0 %v296
        %v568 = vpop.f32.mrb[0].mxu0
        %v569 = vadd.f32 %v279, %v568
        %v570 = vpop.f32.mrb[0].mxu0
        %v571 = vadd.f32 %v279, %v570
        %572 = vmatprep.mubr.f32.mxu0 0.0
        %573 = vmatmul.mubr.f32.gmra.mrb[0].mxu0 %v299
        %v574 = vpop.f32.mrb[0].mxu0
        %v575 = vadd.f32 %v284, %v574
        %v576 = vpop.f32.mrb[0].mxu0
        %v577 = vadd.f32 %v284, %v576
        %578 = vmatprep.mubr.f32.mxu0 0.0
        %579 = vmatmul.mubr.f32.gmra.mrb[0].mxu0 %v302
        %v580 = vpop.f32.mrb[0].mxu0
        %v581 = vadd.f32 %v289, %v580
        %v582 = vpop.f32.mrb[0].mxu0
        %v583 = vadd.f32 %v289, %v582
        %584 = vdwg.mxu0
        %585 = vmatprep.subr.mxu0 0.0
        %586 = vmatpush1.xpose.msra.mxu0 %v401
        %587 = vmatprep.subr.mxu0 0.0
        %588 = vmatpush1.xpose.msra.mxu0 %v404
        %589 = vmatprep.subr.mxu0 0.0
        %590 = vmatpush1.xpose.msra.mxu0 %v407
        %591 = vmatprep.subr.mxu0 0.0
        %592 = vmatpush1.xpose.msra.mxu0 %v410
        %593 = vmatprep.subr.mxu0 0.0
        %594 = vmatpush1.xpose.msra.mxu0 %v413
        %595 = vmatprep.subr.mxu0 0.0
        %596 = vmatpush1.xpose.msra.mxu0 %v416
        %597 = vmatprep.subr.mxu0 0.0
        %598 = vmatpush1.xpose.msra.mxu0 %v419
        %599 = vmatprep.subr.mxu0 0.0
        %600 = vmatpush1.xpose.msra.mxu0 %v422
        %601 = vmatprep.subr.mxu0 0.0
        %602 = vmatpush1.xpose.msra.mxu0 %v425
        %603 = vmatprep.subr.mxu0 0.0
        %604 = vmatpush1.xpose.msra.mxu0 %v428
        %605 = vmatprep.subr.mxu0 0.0
        %606 = vmatpush1.xpose.msra.mxu0 %v431
        %607 = vmatprep.subr.mxu0 0.0
        %608 = vmatpush1.xpose.msra.mxu0 %v434
        %609 = vmatprep.subr.mxu0 0.0
        %610 = vmatpush1.xpose.msra.mxu0 %v437
        %611 = vmatprep.subr.mxu0 0.0
        %612 = vmatpush1.xpose.msra.mxu0 %v440
        %613 = vmatprep.subr.mxu0 0.0
        %614 = vmatpush1.xpose.msra.mxu0 %v443
        %615 = vmatprep.subr.mxu0 0.0
        %616 = vmatpush1.xpose.msra.mxu0 %v446
        %617 = vmatprep.subr.mxu0 0.0
        %618 = vmatpush1.xpose.msra.mxu0 %v449
        %619 = vmatprep.subr.mxu0 0.0
        %620 = vmatpush1.xpose.msra.mxu0 %v452
        %621 = vmatprep.subr.mxu0 0.0
        %622 = vmatpush1.xpose.msra.mxu0 %v455
        %623 = vmatprep.subr.mxu0 0.0
        %624 = vmatpush1.xpose.msra.mxu0 %v458
        %625 = vmatprep.subr.mxu0 0.0
        %626 = vmatpush1.xpose.msra.mxu0 %v461
        %627 = vmatprep.subr.mxu0 0.0
        %628 = vmatpush1.xpose.msra.mxu0 %v464
        %629 = vmatprep.subr.mxu0 0.0
        %630 = vmatpush1.xpose.msra.mxu0 %v467
        %631 = vmatprep.subr.mxu0 0.0
        %632 = vmatpush1.xpose.msra.mxu0 %v470
        %633 = vmatprep.subr.mxu0 0.0
        %634 = vmatpush1.xpose.msra.mxu0 %v473
        %635 = vmatprep.subr.mxu0 0.0
        %636 = vmatpush1.xpose.msra.mxu0 %v476
        %637 = vmatprep.subr.mxu0 0.0
        %638 = vmatpush1.xpose.msra.mxu0 %v479
        %639 = vmatprep.subr.mxu0 0.0
        %640 = vmatpush1.xpose.msra.mxu0 %v482
        %641 = vmatprep.subr.mxu0 0.0
        %642 = vmatpush1.xpose.msra.mxu0 %v485
        %643 = vmatprep.subr.mxu0 0.0
        %644 = vmatpush1.xpose.msra.mxu0 %v488
        %645 = vmatprep.subr.mxu0 0.0
        %646 = vmatpush1.xpose.msra.mxu0 %v491
        %647 = vmatprep.subr.mxu0 0.0
        %648 = vmatpush1.xpose.msra.mxu0 %v494
        %649 = vmatprep.mubr.f32.mxu0 0.0
        %650 = vmatmul.mubr.f32.gmra.mrb[0].mxu0 %v293
        %v651 = vpop.f32.mrb[0].mxu0
        %v652 = vadd.f32 %v274, %v651
        %v653 = vpop.f32.mrb[0].mxu0
        %v654 = vadd.f32 %v274, %v653
        %655 = vmatprep.mubr.f32.mxu0 0.0
        %656 = vmatmul.mubr.f32.gmra.mrb[0].mxu0 %v296
        %v657 = vpop.f32.mrb[0].mxu0
        %v658 = vadd.f32 %v279, %v657
        %v659 = vpop.f32.mrb[0].mxu0
        %v660 = vadd.f32 %v279, %v659
        %661 = vmatprep.mubr.f32.mxu0 0.0
        %662 = vmatmul.mubr.f32.gmra.mrb[0].mxu0 %v299
        %v663 = vpop.f32.mrb[0].mxu0
        %v664 = vadd.f32 %v284, %v663
        %v665 = vpop.f32.mrb[0].mxu0
        %v666 = vadd.f32 %v284, %v665
        %667 = vmatprep.mubr.f32.mxu0 0.0
        %668 = vmatmul.mubr.f32.gmra.mrb[0].mxu0 %v302
        %v669 = vpop.f32.mrb[0].mxu0
        %v670 = vadd.f32 %v289, %v669
        %v671 = vpop.f32.mrb[0].mxu0
        %v672 = vadd.f32 %v289, %v671
        %673 = vdwg.mxu0
        %v674 = vmax.f32 %v563, 0.0
        %v675 = vmax.f32 %v565, 0.0
        %v676 = vmax.f32 %v652, 0.0
        %v677 = vmax.f32 %v654, 0.0
        %v678 = vmax.f32 %v569, 0.0
        %v679 = vmax.f32 %v571, 0.0
        %v680 = vmax.f32 %v658, 0.0
        %v681 = vmax.f32 %v660, 0.0
        %v682 = vmax.f32 %v575, 0.0
        %v683 = vmax.f32 %v577, 0.0
        %v684 = vmax.f32 %v664, 0.0
        %v685 = vmax.f32 %v666, 0.0
        %v686 = vmax.f32 %v581, 0.0
        %v687 = vmax.f32 %v583, 0.0
        %v688 = vmax.f32 %v670, 0.0
        %v689 = vmax.f32 %v672, 0.0
        %690 = vset.pattern.permute.xlu0 1
        %691 = vperm.xlu0 %690, %v264
        %v692 = vpop.permute.xlu0 %691
        %694 = vset.pattern.permute.xlu0 1
        %695 = vperm.xlu0 %694, %v265
        %v696 = vpop.permute.xlu0 %695
        %698 = vset.pattern.permute.xlu0 1
        %699 = vperm.xlu0 %698, %v266
        %v700 = vpop.permute.xlu0 %699
        %702 = vset.pattern.permute.xlu0 1
        %703 = vperm.xlu0 %702, %v267
        %v704 = vpop.permute.xlu0 %703
        %vm706 = vcmask 261120
        %v708 = vsel %vm706, %v254, 0
        %v711 = vsel %vm706, %v255, 0
        %v714 = vsel %vm706, %v256, 0
        %v717 = vsel %vm706, %v257, 0
        %719 = vmatprep.subr.mxu0 %v675
        %720 = vmatpush1.msra.mxu0 %v674
        %721 = vmatprep.subr.mxu0 %v679
        %722 = vmatpush1.msra.mxu0 %v678
        %723 = vmatprep.subr.mxu0 %v683
        %724 = vmatpush1.msra.mxu0 %v682
        %725 = vmatprep.subr.mxu0 %v687
        %726 = vmatpush1.msra.mxu0 %v686
        %727 = vmatprep.subr.mxu0 0.0
        %728 = vmatpush1.msra.mxu0 0.0
        %729 = vmatprep.subr.mxu0 0.0
        %730 = vmatpush1.msra.mxu0 0.0
        %731 = vmatprep.subr.mxu0 0.0
        %732 = vmatpush1.msra.mxu0 0.0
        %733 = vmatprep.subr.mxu0 0.0
        %734 = vmatpush1.msra.mxu0 0.0
        %735 = vmatprep.subr.mxu0 0.0
        %736 = vmatpush1.msra.mxu0 0.0
        %737 = vmatprep.subr.mxu0 0.0
        %738 = vmatpush1.msra.mxu0 0.0
        %739 = vmatprep.subr.mxu0 0.0
        %740 = vmatpush1.msra.mxu0 0.0
        %741 = vmatprep.subr.mxu0 0.0
        %742 = vmatpush1.msra.mxu0 0.0
        %743 = vmatprep.subr.mxu0 0.0
        %744 = vmatpush1.msra.mxu0 0.0
        %745 = vmatprep.subr.mxu0 0.0
        %746 = vmatpush1.msra.mxu0 0.0
        %747 = vmatprep.subr.mxu0 0.0
        %748 = vmatpush1.msra.mxu0 0.0
        %749 = vmatprep.subr.mxu0 0.0
        %750 = vmatpush1.msra.mxu0 0.0
        %751 = vmatprep.subr.mxu0 0.0
        %752 = vmatpush1.msra.mxu0 0.0
        %753 = vmatprep.subr.mxu0 0.0
        %754 = vmatpush1.msra.mxu0 0.0
        %755 = vmatprep.subr.mxu0 0.0
        %756 = vmatpush1.msra.mxu0 0.0
        %757 = vmatprep.subr.mxu0 0.0
        %758 = vmatpush1.msra.mxu0 0.0
        %759 = vmatprep.subr.mxu0 0.0
        %760 = vmatpush1.msra.mxu0 0.0
        %761 = vmatprep.subr.mxu0 0.0
        %762 = vmatpush1.msra.mxu0 0.0
        %763 = vmatprep.subr.mxu0 0.0
        %764 = vmatpush1.msra.mxu0 0.0
        %765 = vmatprep.subr.mxu0 0.0
        %766 = vmatpush1.msra.mxu0 0.0
        %767 = vmatprep.subr.mxu0 0.0
        %768 = vmatpush1.msra.mxu0 0.0
        %769 = vmatprep.subr.mxu0 0.0
        %770 = vmatpush1.msra.mxu0 0.0
        %771 = vmatprep.subr.mxu0 0.0
        %772 = vmatpush1.msra.mxu0 0.0
        %773 = vmatprep.subr.mxu0 0.0
        %774 = vmatpush1.msra.mxu0 0.0
        %775 = vmatprep.subr.mxu0 0.0
        %776 = vmatpush1.msra.mxu0 0.0
        %777 = vmatprep.subr.mxu0 0.0
        %778 = vmatpush1.msra.mxu0 0.0
        %779 = vmatprep.subr.mxu0 0.0
        %780 = vmatpush1.msra.mxu0 0.0
        %781 = vmatprep.subr.mxu0 0.0
        %782 = vmatpush1.msra.mxu0 0.0
        %783 = vmatprep.mubr.f32.mxu0 0.0
        %784 = vmatmul.mubr.f32.gmra.mrb[0].mxu0 %v708
        %v785 = vpop.f32.mrb[0].mxu0
        %v786 = vadd.f32 %v692, %v785
        %v787 = vpop.f32.mrb[0].mxu0
        %v788 = vadd.f32 %v692, %v787
        %789 = vmatprep.mubr.f32.mxu0 0.0
        %790 = vmatmul.mubr.f32.gmra.mrb[0].mxu0 %v711
        %v791 = vpop.f32.mrb[0].mxu0
        %v792 = vadd.f32 %v696, %v791
        %v793 = vpop.f32.mrb[0].mxu0
        %v794 = vadd.f32 %v696, %v793
        %795 = vmatprep.mubr.f32.mxu0 0.0
        %796 = vmatmul.mubr.f32.gmra.mrb[0].mxu0 %v714
        %v797 = vpop.f32.mrb[0].mxu0
        %v798 = vadd.f32 %v700, %v797
        %v799 = vpop.f32.mrb[0].mxu0
        %v800 = vadd.f32 %v700, %v799
        %801 = vmatprep.mubr.f32.mxu0 0.0
        %802 = vmatmul.mubr.f32.gmra.mrb[0].mxu0 %v717
        %v803 = vpop.f32.mrb[0].mxu0
        %v804 = vadd.f32 %v704, %v803
        %v805 = vpop.f32.mrb[0].mxu0
        %v806 = vadd.f32 %v704, %v805
        %807 = vdwg.mxu0
        %808 = vmatprep.subr.mxu0 %v677
        %809 = vmatpush1.msra.mxu0 %v676
        %810 = vmatprep.subr.mxu0 %v681
        %811 = vmatpush1.msra.mxu0 %v680
        %812 = vmatprep.subr.mxu0 %v685
        %813 = vmatpush1.msra.mxu0 %v684
        %814 = vmatprep.subr.mxu0 %v689
        %815 = vmatpush1.msra.mxu0 %v688
        %816 = vmatprep.subr.mxu0 0.0
        %817 = vmatpush1.msra.mxu0 0.0
        %818 = vmatprep.subr.mxu0 0.0
        %819 = vmatpush1.msra.mxu0 0.0
        %820 = vmatprep.subr.mxu0 0.0
        %821 = vmatpush1.msra.mxu0 0.0
        %822 = vmatprep.subr.mxu0 0.0
        %823 = vmatpush1.msra.mxu0 0.0
        %824 = vmatprep.subr.mxu0 0.0
        %825 = vmatpush1.msra.mxu0 0.0
        %826 = vmatprep.subr.mxu0 0.0
        %827 = vmatpush1.msra.mxu0 0.0
        %828 = vmatprep.subr.mxu0 0.0
        %829 = vmatpush1.msra.mxu0 0.0
        %830 = vmatprep.subr.mxu0 0.0
        %831 = vmatpush1.msra.mxu0 0.0
        %832 = vmatprep.subr.mxu0 0.0
        %833 = vmatpush1.msra.mxu0 0.0
        %834 = vmatprep.subr.mxu0 0.0
        %835 = vmatpush1.msra.mxu0 0.0
        %836 = vmatprep.subr.mxu0 0.0
        %837 = vmatpush1.msra.mxu0 0.0
        %838 = vmatprep.subr.mxu0 0.0
        %839 = vmatpush1.msra.mxu0 0.0
        %840 = vmatprep.subr.mxu0 0.0
        %841 = vmatpush1.msra.mxu0 0.0
        %842 = vmatprep.subr.mxu0 0.0
        %843 = vmatpush1.msra.mxu0 0.0
        %844 = vmatprep.subr.mxu0 0.0
        %845 = vmatpush1.msra.mxu0 0.0
        %846 = vmatprep.subr.mxu0 0.0
        %847 = vmatpush1.msra.mxu0 0.0
        %848 = vmatprep.subr.mxu0 0.0
        %849 = vmatpush1.msra.mxu0 0.0
        %850 = vmatprep.subr.mxu0 0.0
        %851 = vmatpush1.msra.mxu0 0.0
        %852 = vmatprep.subr.mxu0 0.0
        %853 = vmatpush1.msra.mxu0 0.0
        %854 = vmatprep.subr.mxu0 0.0
        %855 = vmatpush1.msra.mxu0 0.0
        %856 = vmatprep.subr.mxu0 0.0
        %857 = vmatpush1.msra.mxu0 0.0
        %858 = vmatprep.subr.mxu0 0.0
        %859 = vmatpush1.msra.mxu0 0.0
        %860 = vmatprep.subr.mxu0 0.0
        %861 = vmatpush1.msra.mxu0 0.0
        %862 = vmatprep.subr.mxu0 0.0
        %863 = vmatpush1.msra.mxu0 0.0
        %864 = vmatprep.subr.mxu0 0.0
        %865 = vmatpush1.msra.mxu0 0.0
        %866 = vmatprep.subr.mxu0 0.0
        %867 = vmatpush1.msra.mxu0 0.0
        %868 = vmatprep.subr.mxu0 0.0
        %869 = vmatpush1.msra.mxu0 0.0
        %870 = vmatprep.subr.mxu0 0.0
        %871 = vmatpush1.msra.mxu0 0.0
        %872 = vmatprep.mubr.f32.mxu0 0.0
        %873 = vmatmul.mubr.f32.gmra.mrb[0].mxu0 %v708
        %v874 = vpop.f32.mrb[0].mxu0
        %v875 = vadd.f32 %v692, %v874
        %v876 = vpop.f32.mrb[0].mxu0
        %v877 = vadd.f32 %v692, %v876
        %878 = vmatprep.mubr.f32.mxu0 0.0
        %879 = vmatmul.mubr.f32.gmra.mrb[0].mxu0 %v711
        %v880 = vpop.f32.mrb[0].mxu0
        %v881 = vadd.f32 %v696, %v880
        %v882 = vpop.f32.mrb[0].mxu0
        %v883 = vadd.f32 %v696, %v882
        %884 = vmatprep.mubr.f32.mxu0 0.0
        %885 = vmatmul.mubr.f32.gmra.mrb[0].mxu0 %v714
        %v886 = vpop.f32.mrb[0].mxu0
        %v887 = vadd.f32 %v700, %v886
        %v888 = vpop.f32.mrb[0].mxu0
        %v889 = vadd.f32 %v700, %v888
        %890 = vmatprep.mubr.f32.mxu0 0.0
        %891 = vmatmul.mubr.f32.gmra.mrb[0].mxu0 %v717
        %v892 = vpop.f32.mrb[0].mxu0
        %v893 = vadd.f32 %v704, %v892
        %v894 = vpop.f32.mrb[0].mxu0
        %v895 = vadd.f32 %v704, %v894
        %896 = vdwg.mxu0
        %v897 = vmax.f32 %v786, 0.0
        %v898 = vmax.f32 %v788, 0.0
        %v899 = vmax.f32 %v875, 0.0
        %v900 = vmax.f32 %v877, 0.0
        %v901 = vmax.f32 %v792, 0.0
        %v902 = vmax.f32 %v794, 0.0
        %v903 = vmax.f32 %v881, 0.0
        %v904 = vmax.f32 %v883, 0.0
        %v905 = vmax.f32 %v798, 0.0
        %v906 = vmax.f32 %v800, 0.0
        %v907 = vmax.f32 %v887, 0.0
        %v908 = vmax.f32 %v889, 0.0
        %v909 = vmax.f32 %v804, 0.0
        %v910 = vmax.f32 %v806, 0.0
        %v911 = vmax.f32 %v893, 0.0
        %v912 = vmax.f32 %v895, 0.0
        %914 = vset.pattern.permute.xlu0 0
        %915 = vperm.xlu0 %914, %v268
        %v916 = vpop.permute.xlu0 %915
        %919 = vset.pattern.permute.xlu0 0
        %920 = vperm.xlu0 %919, %v269
        %v921 = vpop.permute.xlu0 %920
        %v924 = vsel %vm706, %v262, 0
        %v927 = vsel %vm706, %v263, 0
        %929 = vmatprep.subr.mxu0 %v898
        %930 = vmatpush1.msra.mxu0 %v897
        %931 = vmatprep.subr.mxu0 %v902
        %932 = vmatpush1.msra.mxu0 %v901
        %933 = vmatprep.subr.mxu0 %v906
        %934 = vmatpush1.msra.mxu0 %v905
        %935 = vmatprep.subr.mxu0 %v910
        %936 = vmatpush1.msra.mxu0 %v909
        %937 = vmatprep.subr.mxu0 0.0
        %938 = vmatpush1.msra.mxu0 0.0
        %939 = vmatprep.subr.mxu0 0.0
        %940 = vmatpush1.msra.mxu0 0.0
        %941 = vmatprep.subr.mxu0 0.0
        %942 = vmatpush1.msra.mxu0 0.0
        %943 = vmatprep.subr.mxu0 0.0
        %944 = vmatpush1.msra.mxu0 0.0
        %945 = vmatprep.subr.mxu0 0.0
        %946 = vmatpush1.msra.mxu0 0.0
        %947 = vmatprep.subr.mxu0 0.0
        %948 = vmatpush1.msra.mxu0 0.0
        %949 = vmatprep.subr.mxu0 0.0
        %950 = vmatpush1.msra.mxu0 0.0
        %951 = vmatprep.subr.mxu0 0.0
        %952 = vmatpush1.msra.mxu0 0.0
        %953 = vmatprep.subr.mxu0 0.0
        %954 = vmatpush1.msra.mxu0 0.0
        %955 = vmatprep.subr.mxu0 0.0
        %956 = vmatpush1.msra.mxu0 0.0
        %957 = vmatprep.subr.mxu0 0.0
        %958 = vmatpush1.msra.mxu0 0.0
        %959 = vmatprep.subr.mxu0 0.0
        %960 = vmatpush1.msra.mxu0 0.0
        %961 = vmatprep.subr.mxu0 0.0
        %962 = vmatpush1.msra.mxu0 0.0
        %963 = vmatprep.subr.mxu0 0.0
        %964 = vmatpush1.msra.mxu0 0.0
        %965 = vmatprep.subr.mxu0 0.0
        %966 = vmatpush1.msra.mxu0 0.0
        %967 = vmatprep.subr.mxu0 0.0
        %968 = vmatpush1.msra.mxu0 0.0
        %969 = vmatprep.subr.mxu0 0.0
        %970 = vmatpush1.msra.mxu0 0.0
        %971 = vmatprep.subr.mxu0 0.0
        %972 = vmatpush1.msra.mxu0 0.0
        %973 = vmatprep.subr.mxu0 0.0
        %974 = vmatpush1.msra.mxu0 0.0
        %975 = vmatprep.subr.mxu0 0.0
        %976 = vmatpush1.msra.mxu0 0.0
        %977 = vmatprep.subr.mxu0 0.0
        %978 = vmatpush1.msra.mxu0 0.0
        %979 = vmatprep.subr.mxu0 0.0
        %980 = vmatpush1.msra.mxu0 0.0
        %981 = vmatprep.subr.mxu0 0.0
        %982 = vmatpush1.msra.mxu0 0.0
        %983 = vmatprep.subr.mxu0 0.0
        %984 = vmatpush1.msra.mxu0 0.0
        %985 = vmatprep.subr.mxu0 0.0
        %986 = vmatpush1.msra.mxu0 0.0
        %987 = vmatprep.subr.mxu0 0.0
        %988 = vmatpush1.msra.mxu0 0.0
        %989 = vmatprep.subr.mxu0 0.0
        %990 = vmatpush1.msra.mxu0 0.0
        %991 = vmatprep.subr.mxu0 0.0
        %992 = vmatpush1.msra.mxu0 0.0
        %993 = vmatprep.mubr.f32.mxu0 0.0
        %994 = vmatmul.mubr.f32.gmra.mrb[0].mxu0 %v924
        %v995 = vpop.f32.mrb[0].mxu0
        %v996 = vadd.f32 %v916, %v995
        %v997 = vpop.f32.mrb[0].mxu0
        %v998 = vadd.f32 %v916, %v997
        %999 = vmatprep.mubr.f32.mxu0 0.0
        %1000 = vmatmul.mubr.f32.gmra.mrb[0].mxu0 %v927
        %v1001 = vpop.f32.mrb[0].mxu0
        %v1002 = vadd.f32 %v921, %v1001
        %v1003 = vpop.f32.mrb[0].mxu0
        %v1004 = vadd.f32 %v921, %v1003
        %1005 = vdwg.mxu0
        %1006 = vmatprep.subr.mxu0 %v900
        %1007 = vmatpush1.msra.mxu0 %v899
        %1008 = vmatprep.subr.mxu0 %v904
        %1009 = vmatpush1.msra.mxu0 %v903
        %1010 = vmatprep.subr.mxu0 %v908
        %1011 = vmatpush1.msra.mxu0 %v907
        %1012 = vmatprep.subr.mxu0 %v912
        %1013 = vmatpush1.msra.mxu0 %v911
        %1014 = vmatprep.subr.mxu0 0.0
        %1015 = vmatpush1.msra.mxu0 0.0
        %1016 = vmatprep.subr.mxu0 0.0
        %1017 = vmatpush1.msra.mxu0 0.0
        %1018 = vmatprep.subr.mxu0 0.0
        %1019 = vmatpush1.msra.mxu0 0.0
        %1020 = vmatprep.subr.mxu0 0.0
        %1021 = vmatpush1.msra.mxu0 0.0
        %1022 = vmatprep.subr.mxu0 0.0
        %1023 = vmatpush1.msra.mxu0 0.0
        %1024 = vmatprep.subr.mxu0 0.0
        %1025 = vmatpush1.msra.mxu0 0.0
        %1026 = vmatprep.subr.mxu0 0.0
        %1027 = vmatpush1.msra.mxu0 0.0
        %1028 = vmatprep.subr.mxu0 0.0
        %1029 = vmatpush1.msra.mxu0 0.0
        %1030 = vmatprep.subr.mxu0 0.0
        %1031 = vmatpush1.msra.mxu0 0.0
        %1032 = vmatprep.subr.mxu0 0.0
        %1033 = vmatpush1.msra.mxu0 0.0
        %1034 = vmatprep.subr.mxu0 0.0
        %1035 = vmatpush1.msra.mxu0 0.0
        %1036 = vmatprep.subr.mxu0 0.0
        %1037 = vmatpush1.msra.mxu0 0.0
        %1038 = vmatprep.subr.mxu0 0.0
        %1039 = vmatpush1.msra.mxu0 0.0
        %1040 = vmatprep.subr.mxu0 0.0
        %1041 = vmatpush1.msra.mxu0 0.0
        %1042 = vmatprep.subr.mxu0 0.0
        %1043 = vmatpush1.msra.mxu0 0.0
        %1044 = vmatprep.subr.mxu0 0.0
        %1045 = vmatpush1.msra.mxu0 0.0
        %1046 = vmatprep.subr.mxu0 0.0
        %1047 = vmatpush1.msra.mxu0 0.0
        %1048 = vmatprep.subr.mxu0 0.0
        %1049 = vmatpush1.msra.mxu0 0.0
        %1050 = vmatprep.subr.mxu0 0.0
        %1051 = vmatpush1.msra.mxu0 0.0
        %1052 = vmatprep.subr.mxu0 0.0
        %1053 = vmatpush1.msra.mxu0 0.0
        %1054 = vmatprep.subr.mxu0 0.0
        %1055 = vmatpush1.msra.mxu0 0.0
        %1056 = vmatprep.subr.mxu0 0.0
        %1057 = vmatpush1.msra.mxu0 0.0
        %1058 = vmatprep.subr.mxu0 0.0
        %1059 = vmatpush1.msra.mxu0 0.0
        %1060 = vmatprep.subr.mxu0 0.0
        %1061 = vmatpush1.msra.mxu0 0.0
        %1062 = vmatprep.subr.mxu0 0.0
        %1063 = vmatpush1.msra.mxu0 0.0
        %1064 = vmatprep.subr.mxu0 0.0
        %1065 = vmatpush1.msra.mxu0 0.0
        %1066 = vmatprep.subr.mxu0 0.0
        %1067 = vmatpush1.msra.mxu0 0.0
        %1068 = vmatprep.subr.mxu0 0.0
        %1069 = vmatpush1.msra.mxu0 0.0
        %1070 = vmatprep.mubr.f32.mxu0 0.0
        %1071 = vmatmul.mubr.f32.gmra.mrb[0].mxu0 %v924
        %v1072 = vpop.f32.mrb[0].mxu0
        %v1073 = vadd.f32 %v916, %v1072
        %v1074 = vpop.f32.mrb[0].mxu0
        %v1075 = vadd.f32 %v916, %v1074
        %1076 = vmatprep.mubr.f32.mxu0 0.0
        %1077 = vmatmul.mubr.f32.gmra.mrb[0].mxu0 %v927
        %v1078 = vpop.f32.mrb[0].mxu0
        %v1079 = vadd.f32 %v921, %v1078
        %v1080 = vpop.f32.mrb[0].mxu0
        %v1081 = vadd.f32 %v921, %v1080
        %1082 = vdwg.mxu0
        %1083 = vxpose.xlu0.b32.start [1/16] %v996, 128
        %1084 = vxpose.xlu0.b32.cont [2/16] %v1002, 128
        %1085 = vxpose.xlu0.b32.cont [3/16] 0.0, 128
        %1086 = vxpose.xlu0.b32.cont [4/16] 0.0, 128
        %1087 = vxpose.xlu0.b32.cont [5/16] 0.0, 128
        %1088 = vxpose.xlu0.b32.cont [6/16] 0.0, 128
        %1089 = vxpose.xlu0.b32.cont [7/16] 0.0, 128
        %1090 = vxpose.xlu0.b32.cont [8/16] 0.0, 128
        %1091 = vxpose.xlu0.b32.cont [9/16] 0.0, 128
        %1092 = vxpose.xlu0.b32.cont [10/16] 0.0, 128
        %1093 = vxpose.xlu0.b32.cont [11/16] 0.0, 128
        %1094 = vxpose.xlu0.b32.cont [12/16] 0.0, 128
        %1095 = vxpose.xlu0.b32.cont [13/16] 0.0, 128
        %1096 = vxpose.xlu0.b32.cont [14/16] 0.0, 128
        %1097 = vxpose.xlu0.b32.cont [15/16] 0.0, 128
        %1098 = vxpose.xlu0.b32.end [16/16] 0.0, 128
        %v1099 = vpop.trf.xlu0
        %v1100 = vpop.trf.xlu0
        %v1101 = vpop.trf.xlu0
        %v1102 = vpop.trf.xlu0
        %v1103 = vpop.trf.xlu0
        %v1104 = vpop.trf.xlu0
        %v1105 = vpop.trf.xlu0
        %v1106 = vpop.trf.xlu0
        %v1107 = vpop.trf.xlu0
        %v1108 = vpop.trf.xlu0
        %v1109 = vpop.trf.xlu0
        %v1110 = vpop.trf.xlu0
        %v1111 = vpop.trf.xlu0
        %v1112 = vpop.trf.xlu0
        %v1113 = vpop.trf.xlu0
        %v1114 = vpop.trf.xlu0
        %1115 = vxpose.xlu0.b32.start [1/16] %v998, 128
        %1116 = vxpose.xlu0.b32.cont [2/16] %v1004, 128
        %1117 = vxpose.xlu0.b32.cont [3/16] 0.0, 128
        %1118 = vxpose.xlu0.b32.cont [4/16] 0.0, 128
        %1119 = vxpose.xlu0.b32.cont [5/16] 0.0, 128
        %1120 = vxpose.xlu0.b32.cont [6/16] 0.0, 128
        %1121 = vxpose.xlu0.b32.cont [7/16] 0.0, 128
        %1122 = vxpose.xlu0.b32.cont [8/16] 0.0, 128
        %1123 = vxpose.xlu0.b32.cont [9/16] 0.0, 128
        %1124 = vxpose.xlu0.b32.cont [10/16] 0.0, 128
        %1125 = vxpose.xlu0.b32.cont [11/16] 0.0, 128
        %1126 = vxpose.xlu0.b32.cont [12/16] 0.0, 128
        %1127 = vxpose.xlu0.b32.cont [13/16] 0.0, 128
        %1128 = vxpose.xlu0.b32.cont [14/16] 0.0, 128
        %1129 = vxpose.xlu0.b32.cont [15/16] 0.0, 128
        %1130 = vxpose.xlu0.b32.end [16/16] 0.0, 128
        %v1131 = vpop.trf.xlu0
        %v1132 = vpop.trf.xlu0
        %v1133 = vpop.trf.xlu0
        %v1134 = vpop.trf.xlu0
        %v1135 = vpop.trf.xlu0
        %v1136 = vpop.trf.xlu0
        %v1137 = vpop.trf.xlu0
        %v1138 = vpop.trf.xlu0
        %v1139 = vpop.trf.xlu0
        %v1140 = vpop.trf.xlu0
        %v1141 = vpop.trf.xlu0
        %v1142 = vpop.trf.xlu0
        %v1143 = vpop.trf.xlu0
        %v1144 = vpop.trf.xlu0
        %v1145 = vpop.trf.xlu0
        %v1146 = vpop.trf.xlu0
        %1147 = vxpose.xlu0.b32.start [1/16] %v1073, 128
        %1148 = vxpose.xlu0.b32.cont [2/16] %v1079, 128
        %1149 = vxpose.xlu0.b32.cont [3/16] 0.0, 128
        %1150 = vxpose.xlu0.b32.cont [4/16] 0.0, 128
        %1151 = vxpose.xlu0.b32.cont [5/16] 0.0, 128
        %1152 = vxpose.xlu0.b32.cont [6/16] 0.0, 128
        %1153 = vxpose.xlu0.b32.cont [7/16] 0.0, 128
        %1154 = vxpose.xlu0.b32.cont [8/16] 0.0, 128
        %1155 = vxpose.xlu0.b32.cont [9/16] 0.0, 128
        %1156 = vxpose.xlu0.b32.cont [10/16] 0.0, 128
        %1157 = vxpose.xlu0.b32.cont [11/16] 0.0, 128
        %1158 = vxpose.xlu0.b32.cont [12/16] 0.0, 128
        %1159 = vxpose.xlu0.b32.cont [13/16] 0.0, 128
        %1160 = vxpose.xlu0.b32.cont [14/16] 0.0, 128
        %1161 = vxpose.xlu0.b32.cont [15/16] 0.0, 128
        %1162 = vxpose.xlu0.b32.end [16/16] 0.0, 128
        %v1163 = vpop.trf.xlu0
        %v1164 = vpop.trf.xlu0
        %v1165 = vpop.trf.xlu0
        %v1166 = vpop.trf.xlu0
        %v1167 = vpop.trf.xlu0
        %v1168 = vpop.trf.xlu0
        %v1169 = vpop.trf.xlu0
        %v1170 = vpop.trf.xlu0
        %v1171 = vpop.trf.xlu0
        %v1172 = vpop.trf.xlu0
        %v1173 = vpop.trf.xlu0
        %v1174 = vpop.trf.xlu0
        %v1175 = vpop.trf.xlu0
        %v1176 = vpop.trf.xlu0
        %v1177 = vpop.trf.xlu0
        %v1178 = vpop.trf.xlu0
        %1179 = vxpose.xlu0.b32.start [1/16] %v1075, 128
        %1180 = vxpose.xlu0.b32.cont [2/16] %v1081, 128
        %1181 = vxpose.xlu0.b32.cont [3/16] 0.0, 128
        %1182 = vxpose.xlu0.b32.cont [4/16] 0.0, 128
        %1183 = vxpose.xlu0.b32.cont [5/16] 0.0, 128
        %1184 = vxpose.xlu0.b32.cont [6/16] 0.0, 128
        %1185 = vxpose.xlu0.b32.cont [7/16] 0.0, 128
        %1186 = vxpose.xlu0.b32.cont [8/16] 0.0, 128
        %1187 = vxpose.xlu0.b32.cont [9/16] 0.0, 128
        %1188 = vxpose.xlu0.b32.cont [10/16] 0.0, 128
        %1189 = vxpose.xlu0.b32.cont [11/16] 0.0, 128
        %1190 = vxpose.xlu0.b32.cont [12/16] 0.0, 128
        %1191 = vxpose.xlu0.b32.cont [13/16] 0.0, 128
        %1192 = vxpose.xlu0.b32.cont [14/16] 0.0, 128
        %1193 = vxpose.xlu0.b32.cont [15/16] 0.0, 128
        %1194 = vxpose.xlu0.b32.end [16/16] 0.0, 128
        %v1195 = vpop.trf.xlu0
        %v1196 = vpop.trf.xlu0
        %v1197 = vpop.trf.xlu0
        %v1198 = vpop.trf.xlu0
        %v1199 = vpop.trf.xlu0
        %v1200 = vpop.trf.xlu0
        %v1201 = vpop.trf.xlu0
        %v1202 = vpop.trf.xlu0
        %v1203 = vpop.trf.xlu0
        %v1204 = vpop.trf.xlu0
        %v1205 = vpop.trf.xlu0
        %v1206 = vpop.trf.xlu0
        %v1207 = vpop.trf.xlu0
        %v1208 = vpop.trf.xlu0
        %v1209 = vpop.trf.xlu0
        %v1210 = vpop.trf.xlu0
        %vm1211 = vcmask 130048
        %1212 = vst.msk [vmem:[%s184] sm:$0xff] %vm1211, %v1099
        %1213 = vst.msk [vmem:[%s184 + $0x8] sm:$0xff] %vm1211, %v1100
        %1214 = vst.msk [vmem:[%s184 + $0x10] sm:$0xff] %vm1211, %v1101
        %1215 = vst.msk [vmem:[%s184 + $0x18] sm:$0xff] %vm1211, %v1102
        %1216 = vst.msk [vmem:[%s184 + $0x20] sm:$0xff] %vm1211, %v1103
        %1217 = vst.msk [vmem:[%s184 + $0x28] sm:$0xff] %vm1211, %v1104
        %1218 = vst.msk [vmem:[%s184 + $0x30] sm:$0xff] %vm1211, %v1105
        %1219 = vst.msk [vmem:[%s184 + $0x38] sm:$0xff] %vm1211, %v1106
        %1220 = vst.msk [vmem:[%s184 + $0x40] sm:$0xff] %vm1211, %v1107
        %1221 = vst.msk [vmem:[%s184 + $0x48] sm:$0xff] %vm1211, %v1108
        %1222 = vst.msk [vmem:[%s184 + $0x50] sm:$0xff] %vm1211, %v1109
        %1223 = vst.msk [vmem:[%s184 + $0x58] sm:$0xff] %vm1211, %v1110
        %1224 = vst.msk [vmem:[%s184 + $0x60] sm:$0xff] %vm1211, %v1111
        %1225 = vst.msk [vmem:[%s184 + $0x68] sm:$0xff] %vm1211, %v1112
        %1226 = vst.msk [vmem:[%s184 + $0x70] sm:$0xff] %vm1211, %v1113
        %1227 = vst.msk [vmem:[%s184 + $0x78] sm:$0xff] %vm1211, %v1114
        %1228 = vst.msk [vmem:[%s184 + $0x80] sm:$0xff] %vm1211, %v1131
        %1229 = vst.msk [vmem:[%s184 + $0x88] sm:$0xff] %vm1211, %v1132
        %1230 = vst.msk [vmem:[%s184 + $0x90] sm:$0xff] %vm1211, %v1133
        %1231 = vst.msk [vmem:[%s184 + $0x98] sm:$0xff] %vm1211, %v1134
        %1232 = vst.msk [vmem:[%s184 + $0xa0] sm:$0xff] %vm1211, %v1135
        %1233 = vst.msk [vmem:[%s184 + $0xa8] sm:$0xff] %vm1211, %v1136
        %1234 = vst.msk [vmem:[%s184 + $0xb0] sm:$0xff] %vm1211, %v1137
        %1235 = vst.msk [vmem:[%s184 + $0xb8] sm:$0xff] %vm1211, %v1138
        %1236 = vst.msk [vmem:[%s184 + $0xc0] sm:$0xff] %vm1211, %v1139
        %1237 = vst.msk [vmem:[%s184 + $0xc8] sm:$0xff] %vm1211, %v1140
        %1238 = vst.msk [vmem:[%s184 + $0xd0] sm:$0xff] %vm1211, %v1141
        %1239 = vst.msk [vmem:[%s184 + $0xd8] sm:$0xff] %vm1211, %v1142
        %1240 = vst.msk [vmem:[%s184 + $0xe0] sm:$0xff] %vm1211, %v1143
        %1241 = vst.msk [vmem:[%s184 + $0xe8] sm:$0xff] %vm1211, %v1144
        %1242 = vst.msk [vmem:[%s184 + $0xf0] sm:$0xff] %vm1211, %v1145
        %1243 = vst.msk [vmem:[%s184 + $0xf8] sm:$0xff] %vm1211, %v1146
        %1244 = vst.msk [vmem:[%s184 + $0x100] sm:$0xff] %vm1211, %v1163
        %1245 = vst.msk [vmem:[%s184 + $0x108] sm:$0xff] %vm1211, %v1164
        %1246 = vst.msk [vmem:[%s184 + $0x110] sm:$0xff] %vm1211, %v1165
        %1247 = vst.msk [vmem:[%s184 + $0x118] sm:$0xff] %vm1211, %v1166
        %1248 = vst.msk [vmem:[%s184 + $0x120] sm:$0xff] %vm1211, %v1167
        %1249 = vst.msk [vmem:[%s184 + $0x128] sm:$0xff] %vm1211, %v1168
        %1250 = vst.msk [vmem:[%s184 + $0x130] sm:$0xff] %vm1211, %v1169
        %1251 = vst.msk [vmem:[%s184 + $0x138] sm:$0xff] %vm1211, %v1170
        %1252 = vst.msk [vmem:[%s184 + $0x140] sm:$0xff] %vm1211, %v1171
        %1253 = vst.msk [vmem:[%s184 + $0x148] sm:$0xff] %vm1211, %v1172
        %1254 = vst.msk [vmem:[%s184 + $0x150] sm:$0xff] %vm1211, %v1173
        %1255 = vst.msk [vmem:[%s184 + $0x158] sm:$0xff] %vm1211, %v1174
        %1256 = vst.msk [vmem:[%s184 + $0x160] sm:$0xff] %vm1211, %v1175
        %1257 = vst.msk [vmem:[%s184 + $0x168] sm:$0xff] %vm1211, %v1176
        %1258 = vst.msk [vmem:[%s184 + $0x170] sm:$0xff] %vm1211, %v1177
        %1259 = vst.msk [vmem:[%s184 + $0x178] sm:$0xff] %vm1211, %v1178
        %1260 = vst.msk [vmem:[%s184 + $0x180] sm:$0xff] %vm1211, %v1195
        %1261 = vst.msk [vmem:[%s184 + $0x188] sm:$0xff] %vm1211, %v1196
        %1262 = vst.msk [vmem:[%s184 + $0x190] sm:$0xff] %vm1211, %v1197
        %1263 = vst.msk [vmem:[%s184 + $0x198] sm:$0xff] %vm1211, %v1198
        %1264 = vst.msk [vmem:[%s184 + $0x1a0] sm:$0xff] %vm1211, %v1199
        %1265 = vst.msk [vmem:[%s184 + $0x1a8] sm:$0xff] %vm1211, %v1200
        %1266 = vst.msk [vmem:[%s184 + $0x1b0] sm:$0xff] %vm1211, %v1201
        %1267 = vst.msk [vmem:[%s184 + $0x1b8] sm:$0xff] %vm1211, %v1202
        %1268 = vst.msk [vmem:[%s184 + $0x1c0] sm:$0xff] %vm1211, %v1203
        %1269 = vst.msk [vmem:[%s184 + $0x1c8] sm:$0xff] %vm1211, %v1204
        %1270 = vst.msk [vmem:[%s184 + $0x1d0] sm:$0xff] %vm1211, %v1205
        %1271 = vst.msk [vmem:[%s184 + $0x1d8] sm:$0xff] %vm1211, %v1206
        %1272 = vst.msk [vmem:[%s184 + $0x1e0] sm:$0xff] %vm1211, %v1207
        %1273 = vst.msk [vmem:[%s184 + $0x1e8] sm:$0xff] %vm1211, %v1208
        %1274 = vst.msk [vmem:[%s184 + $0x1f0] sm:$0xff] %vm1211, %v1209
        %1275 = vst.msk [vmem:[%s184 + $0x1f8] sm:$0xff] %vm1211, %v1210
        %1276 = vset.pattern.permute.xlu0 2
        %1277 = vperm.xlu0 %1276, %v264
        %v1278 = vpop.permute.xlu0 %1277
        %1280 = vset.pattern.permute.xlu0 2
        %1281 = vperm.xlu0 %1280, %v265
        %v1282 = vpop.permute.xlu0 %1281
        %1284 = vset.pattern.permute.xlu0 2
        %1285 = vperm.xlu0 %1284, %v266
        %v1286 = vpop.permute.xlu0 %1285
        %1288 = vset.pattern.permute.xlu0 2
        %1289 = vperm.xlu0 %1288, %v267
        %v1290 = vpop.permute.xlu0 %1289
        %v1293 = vsel %vm706, %v258, 0
        %v1296 = vsel %vm706, %v259, 0
        %v1299 = vsel %vm706, %v260, 0
        %v1302 = vsel %vm706, %v261, 0
        %1304 = vmatprep.subr.mxu0 %v898
        %1305 = vmatpush1.msra.mxu0 %v897
        %1306 = vmatprep.subr.mxu0 %v902
        %1307 = vmatpush1.msra.mxu0 %v901
        %1308 = vmatprep.subr.mxu0 %v906
        %1309 = vmatpush1.msra.mxu0 %v905
        %1310 = vmatprep.subr.mxu0 %v910
        %1311 = vmatpush1.msra.mxu0 %v909
        %1312 = vmatprep.subr.mxu0 0.0
        %1313 = vmatpush1.msra.mxu0 0.0
        %1314 = vmatprep.subr.mxu0 0.0
        %1315 = vmatpush1.msra.mxu0 0.0
        %1316 = vmatprep.subr.mxu0 0.0
        %1317 = vmatpush1.msra.mxu0 0.0
        %1318 = vmatprep.subr.mxu0 0.0
        %1319 = vmatpush1.msra.mxu0 0.0
        %1320 = vmatprep.subr.mxu0 0.0
        %1321 = vmatpush1.msra.mxu0 0.0
        %1322 = vmatprep.subr.mxu0 0.0
        %1323 = vmatpush1.msra.mxu0 0.0
        %1324 = vmatprep.subr.mxu0 0.0
        %1325 = vmatpush1.msra.mxu0 0.0
        %1326 = vmatprep.subr.mxu0 0.0
        %1327 = vmatpush1.msra.mxu0 0.0
        %1328 = vmatprep.subr.mxu0 0.0
        %1329 = vmatpush1.msra.mxu0 0.0
        %1330 = vmatprep.subr.mxu0 0.0
        %1331 = vmatpush1.msra.mxu0 0.0
        %1332 = vmatprep.subr.mxu0 0.0
        %1333 = vmatpush1.msra.mxu0 0.0
        %1334 = vmatprep.subr.mxu0 0.0
        %1335 = vmatpush1.msra.mxu0 0.0
        %1336 = vmatprep.subr.mxu0 0.0
        %1337 = vmatpush1.msra.mxu0 0.0
        %1338 = vmatprep.subr.mxu0 0.0
        %1339 = vmatpush1.msra.mxu0 0.0
        %1340 = vmatprep.subr.mxu0 0.0
        %1341 = vmatpush1.msra.mxu0 0.0
        %1342 = vmatprep.subr.mxu0 0.0
        %1343 = vmatpush1.msra.mxu0 0.0
        %1344 = vmatprep.subr.mxu0 0.0
        %1345 = vmatpush1.msra.mxu0 0.0
        %1346 = vmatprep.subr.mxu0 0.0
        %1347 = vmatpush1.msra.mxu0 0.0
        %1348 = vmatprep.subr.mxu0 0.0
        %1349 = vmatpush1.msra.mxu0 0.0
        %1350 = vmatprep.subr.mxu0 0.0
        %1351 = vmatpush1.msra.mxu0 0.0
        %1352 = vmatprep.subr.mxu0 0.0
        %1353 = vmatpush1.msra.mxu0 0.0
        %1354 = vmatprep.subr.mxu0 0.0
        %1355 = vmatpush1.msra.mxu0 0.0
        %1356 = vmatprep.subr.mxu0 0.0
        %1357 = vmatpush1.msra.mxu0 0.0
        %1358 = vmatprep.subr.mxu0 0.0
        %1359 = vmatpush1.msra.mxu0 0.0
        %1360 = vmatprep.subr.mxu0 0.0
        %1361 = vmatpush1.msra.mxu0 0.0
        %1362 = vmatprep.subr.mxu0 0.0
        %1363 = vmatpush1.msra.mxu0 0.0
        %1364 = vmatprep.subr.mxu0 0.0
        %1365 = vmatpush1.msra.mxu0 0.0
        %1366 = vmatprep.subr.mxu0 0.0
        %1367 = vmatpush1.msra.mxu0 0.0
        %1368 = vmatprep.mubr.f32.mxu0 0.0
        %1369 = vmatmul.mubr.f32.gmra.mrb[0].mxu0 %v1293
        %v1370 = vpop.f32.mrb[0].mxu0
        %v1371 = vadd.f32 %v1278, %v1370
        %v1372 = vpop.f32.mrb[0].mxu0
        %v1373 = vadd.f32 %v1278, %v1372
        %1374 = vmatprep.mubr.f32.mxu0 0.0
        %1375 = vmatmul.mubr.f32.gmra.mrb[0].mxu0 %v1296
        %v1376 = vpop.f32.mrb[0].mxu0
        %v1377 = vadd.f32 %v1282, %v1376
        %v1378 = vpop.f32.mrb[0].mxu0
        %v1379 = vadd.f32 %v1282, %v1378
        %1380 = vmatprep.mubr.f32.mxu0 0.0
        %1381 = vmatmul.mubr.f32.gmra.mrb[0].mxu0 %v1299
        %v1382 = vpop.f32.mrb[0].mxu0
        %v1383 = vadd.f32 %v1286, %v1382
        %v1384 = vpop.f32.mrb[0].mxu0
        %v1385 = vadd.f32 %v1286, %v1384
        %1386 = vmatprep.mubr.f32.mxu0 0.0
        %1387 = vmatmul.mubr.f32.gmra.mrb[0].mxu0 %v1302
        %v1388 = vpop.f32.mrb[0].mxu0
        %v1389 = vadd.f32 %v1290, %v1388
        %v1390 = vpop.f32.mrb[0].mxu0
        %v1391 = vadd.f32 %v1290, %v1390
        %1392 = vdwg.mxu0
        %1393 = vmatprep.subr.mxu0 %v900
        %1394 = vmatpush1.msra.mxu0 %v899
        %1395 = vmatprep.subr.mxu0 %v904
        %1396 = vmatpush1.msra.mxu0 %v903
        %1397 = vmatprep.subr.mxu0 %v908
        %1398 = vmatpush1.msra.mxu0 %v907
        %1399 = vmatprep.subr.mxu0 %v912
        %1400 = vmatpush1.msra.mxu0 %v911
        %1401 = vmatprep.subr.mxu0 0.0
        %1402 = vmatpush1.msra.mxu0 0.0
        %1403 = vmatprep.subr.mxu0 0.0
        %1404 = vmatpush1.msra.mxu0 0.0
        %1405 = vmatprep.subr.mxu0 0.0
        %1406 = vmatpush1.msra.mxu0 0.0
        %1407 = vmatprep.subr.mxu0 0.0
        %1408 = vmatpush1.msra.mxu0 0.0
        %1409 = vmatprep.subr.mxu0 0.0
        %1410 = vmatpush1.msra.mxu0 0.0
        %1411 = vmatprep.subr.mxu0 0.0
        %1412 = vmatpush1.msra.mxu0 0.0
        %1413 = vmatprep.subr.mxu0 0.0
        %1414 = vmatpush1.msra.mxu0 0.0
        %1415 = vmatprep.subr.mxu0 0.0
        %1416 = vmatpush1.msra.mxu0 0.0
        %1417 = vmatprep.subr.mxu0 0.0
        %1418 = vmatpush1.msra.mxu0 0.0
        %1419 = vmatprep.subr.mxu0 0.0
        %1420 = vmatpush1.msra.mxu0 0.0
        %1421 = vmatprep.subr.mxu0 0.0
        %1422 = vmatpush1.msra.mxu0 0.0
        %1423 = vmatprep.subr.mxu0 0.0
        %1424 = vmatpush1.msra.mxu0 0.0
        %1425 = vmatprep.subr.mxu0 0.0
        %1426 = vmatpush1.msra.mxu0 0.0
        %1427 = vmatprep.subr.mxu0 0.0
        %1428 = vmatpush1.msra.mxu0 0.0
        %1429 = vmatprep.subr.mxu0 0.0
        %1430 = vmatpush1.msra.mxu0 0.0
        %1431 = vmatprep.subr.mxu0 0.0
        %1432 = vmatpush1.msra.mxu0 0.0
        %1433 = vmatprep.subr.mxu0 0.0
        %1434 = vmatpush1.msra.mxu0 0.0
        %1435 = vmatprep.subr.mxu0 0.0
        %1436 = vmatpush1.msra.mxu0 0.0
        %1437 = vmatprep.subr.mxu0 0.0
        %1438 = vmatpush1.msra.mxu0 0.0
        %1439 = vmatprep.subr.mxu0 0.0
        %1440 = vmatpush1.msra.mxu0 0.0
        %1441 = vmatprep.subr.mxu0 0.0
        %1442 = vmatpush1.msra.mxu0 0.0
        %1443 = vmatprep.subr.mxu0 0.0
        %1444 = vmatpush1.msra.mxu0 0.0
        %1445 = vmatprep.subr.mxu0 0.0
        %1446 = vmatpush1.msra.mxu0 0.0
        %1447 = vmatprep.subr.mxu0 0.0
        %1448 = vmatpush1.msra.mxu0 0.0
        %1449 = vmatprep.subr.mxu0 0.0
        %1450 = vmatpush1.msra.mxu0 0.0
        %1451 = vmatprep.subr.mxu0 0.0
        %1452 = vmatpush1.msra.mxu0 0.0
        %1453 = vmatprep.subr.mxu0 0.0
        %1454 = vmatpush1.msra.mxu0 0.0
        %1455 = vmatprep.subr.mxu0 0.0
        %1456 = vmatpush1.msra.mxu0 0.0
        %1457 = vmatprep.mubr.f32.mxu0 0.0
        %1458 = vmatmul.mubr.f32.gmra.mrb[0].mxu0 %v1293
        %v1459 = vpop.f32.mrb[0].mxu0
        %v1460 = vadd.f32 %v1278, %v1459
        %v1461 = vpop.f32.mrb[0].mxu0
        %v1462 = vadd.f32 %v1278, %v1461
        %1463 = vmatprep.mubr.f32.mxu0 0.0
        %1464 = vmatmul.mubr.f32.gmra.mrb[0].mxu0 %v1296
        %v1465 = vpop.f32.mrb[0].mxu0
        %v1466 = vadd.f32 %v1282, %v1465
        %v1467 = vpop.f32.mrb[0].mxu0
        %v1468 = vadd.f32 %v1282, %v1467
        %1469 = vmatprep.mubr.f32.mxu0 0.0
        %1470 = vmatmul.mubr.f32.gmra.mrb[0].mxu0 %v1299
        %v1471 = vpop.f32.mrb[0].mxu0
        %v1472 = vadd.f32 %v1286, %v1471
        %v1473 = vpop.f32.mrb[0].mxu0
        %v1474 = vadd.f32 %v1286, %v1473
        %1475 = vmatprep.mubr.f32.mxu0 0.0
        %1476 = vmatmul.mubr.f32.gmra.mrb[0].mxu0 %v1302
        %v1477 = vpop.f32.mrb[0].mxu0
        %v1478 = vadd.f32 %v1290, %v1477
        %v1479 = vpop.f32.mrb[0].mxu0
        %v1480 = vadd.f32 %v1290, %v1479
        %1481 = vdwg.mxu0
        %v1482 = vmax.f32 %v1371, 0.0
        %v1483 = vmax.f32 %v1373, 0.0
        %v1484 = vmax.f32 %v1460, 0.0
        %v1485 = vmax.f32 %v1462, 0.0
        %v1486 = vmax.f32 %v1377, 0.0
        %v1487 = vmax.f32 %v1379, 0.0
        %v1488 = vmax.f32 %v1466, 0.0
        %v1489 = vmax.f32 %v1468, 0.0
        %v1490 = vmax.f32 %v1383, 0.0
        %v1491 = vmax.f32 %v1385, 0.0
        %v1492 = vmax.f32 %v1472, 0.0
        %v1493 = vmax.f32 %v1474, 0.0
        %v1494 = vmax.f32 %v1389, 0.0
        %v1495 = vmax.f32 %v1391, 0.0
        %v1496 = vmax.f32 %v1478, 0.0
        %v1497 = vmax.f32 %v1480, 0.0
        %1498 = vset.pattern.permute.xlu0 3
        %1499 = vperm.xlu0 %1498, %v264
        %v1500 = vpop.permute.xlu0 %1499
        %1502 = vset.pattern.permute.xlu0 3
        %1503 = vperm.xlu0 %1502, %v265
        %v1504 = vpop.permute.xlu0 %1503
        %1506 = vset.pattern.permute.xlu0 3
        %1507 = vperm.xlu0 %1506, %v266
        %v1508 = vpop.permute.xlu0 %1507
        %1510 = vset.pattern.permute.xlu0 3
        %1511 = vperm.xlu0 %1510, %v267
        %v1512 = vpop.permute.xlu0 %1511
        %v1514 = vmul.f32 %v1500, %v1482
        %v1515 = vmul.f32 %v1500, %v1483
        %v1516 = vmul.f32 %v1500, %v1484
        %v1517 = vmul.f32 %v1500, %v1485
        %v1518 = vmul.f32 %v1504, %v1486
        %v1519 = vmul.f32 %v1504, %v1487
        %v1520 = vmul.f32 %v1504, %v1488
        %v1521 = vmul.f32 %v1504, %v1489
        %v1522 = vmul.f32 %v1508, %v1490
        %v1523 = vmul.f32 %v1508, %v1491
        %v1524 = vmul.f32 %v1508, %v1492
        %v1525 = vmul.f32 %v1508, %v1493
        %v1526 = vmul.f32 %v1512, %v1494
        %v1527 = vmul.f32 %v1512, %v1495
        %v1528 = vmul.f32 %v1512, %v1496
        %v1529 = vmul.f32 %v1512, %v1497
        %v1530 = vadd.f32 %v1514, %v1518
        %v1531 = vadd.f32 %v1530, %v1522
        %v1532 = vadd.f32 %v1531, %v1526
        %v1533 = vrot.slane %v1532, 4
        %v1534 = vadd.f32 %v1532, %v1533
        %v1535 = vrot.slane %v1534, 2
        %v1536 = vadd.f32 %v1534, %v1535
        %v1537 = vrot.slane %v1536, 1
        %v1538 = vadd.f32 %v1536, %v1537
        %v1539 = vadd.f32 %v1515, %v1519
        %v1540 = vadd.f32 %v1539, %v1523
        %v1541 = vadd.f32 %v1540, %v1527
        %v1542 = vrot.slane %v1541, 4
        %v1543 = vadd.f32 %v1541, %v1542
        %v1544 = vrot.slane %v1543, 2
        %v1545 = vadd.f32 %v1543, %v1544
        %v1546 = vrot.slane %v1545, 1
        %v1547 = vadd.f32 %v1545, %v1546
        %v1548 = vadd.f32 %v1516, %v1520
        %v1549 = vadd.f32 %v1548, %v1524
        %v1550 = vadd.f32 %v1549, %v1528
        %v1551 = vrot.slane %v1550, 4
        %v1552 = vadd.f32 %v1550, %v1551
        %v1553 = vrot.slane %v1552, 2
        %v1554 = vadd.f32 %v1552, %v1553
        %v1555 = vrot.slane %v1554, 1
        %v1556 = vadd.f32 %v1554, %v1555
        %v1557 = vadd.f32 %v1517, %v1521
        %v1558 = vadd.f32 %v1557, %v1525
        %v1559 = vadd.f32 %v1558, %v1529
        %v1560 = vrot.slane %v1559, 4
        %v1561 = vadd.f32 %v1559, %v1560
        %v1562 = vrot.slane %v1561, 2
        %v1563 = vadd.f32 %v1561, %v1562
        %v1564 = vrot.slane %v1563, 1
        %v1565 = vadd.f32 %v1563, %v1564
        %1567 = vset.pattern.permute.xlu0 1
        %1568 = vperm.xlu0 %1567, %v270
        %v1569 = vpop.permute.xlu0 %1568
        %v1571 = vadd.f32 %v1538, %v1569
        %v1572 = vadd.f32 %v1547, %v1569
        %v1573 = vadd.f32 %v1556, %v1569
        %v1574 = vadd.f32 %v1565, %v1569
        %v1579 = vcombine.low %v1571, %v1572
        %v1580 = vcombine.low %v1573, %v1574
        %v1582 = vunpack.c.l.s4 1966171168
        %v1583 = vunpack.c.0.s8 %v1582
        %v1584 = vlaneseq
        %v1585 = vshrl.u32 %v1584, 7
        %v1586 = vsub.s32 %v1583, %v1585
        %v1587 = vrot.slane %v1579, %v1586
        %v1589 = vunpack.c.l.s4 1966171168
        %v1590 = vunpack.c.0.s8 %v1589
        %v1591 = vlaneseq
        %v1592 = vshrl.u32 %v1591, 7
        %v1593 = vsub.s32 %v1590, %v1592
        %v1594 = vrot.slane %v1580, %v1593
        %v1595 = vcombine.low %v1587, %v1594
        %v1597 = vunpack.c.l.s4 1966171168
        %v1598 = vunpack.c.0.s8 %v1597
        %v1599 = vlaneseq
        %v1600 = vshrl.u32 %v1599, 7
        %v1601 = vsub.s32 %v1598, %v1600
        %v1602 = vrot.slane %v1595, %v1601
        %v1604 = vlaneseq
        %vm1605 = vcmp.ge.s32.totalorder %v1604, 0
        %vm1606 = vcmp.lt.s32.totalorder %v1604, 512
        %vm1607 = vmand %vm1605, %vm1606
        %1608 = vst.msk [vmem:[%s165] sm:$0xf] %vm1607, %v1602
        %s1609 = sand.u32 %s73, 1
        %s1610 = scalar_lea.sflag [#allocation3], %s1609
        %s1611 = sand.u32 %s73, 1
        %s1612 = smul.addr %s1611, 4
        %s1613 = scalar_lea.vmem [#allocation2], %s1612
        %s1614 = smul.u32 64, %s18
        %p1615 = scmp.lt.s32.totalorder %s1614, 127
        %s1616 = scalar_select %p1615, %s1614, 127
        %s1617 = smul.addr %s1616, 8
        %s1618 = scalar_lea.vmem %s3, %s1617
        // Predicated region
        $region29: #{tpu_custom_call.1} parent=27 // pred_check
          %p1619 = pneg %p83
        $region30: #{tpu_custom_call.1} parent=27 // pred_check_branch
          %1621 = sbr.rel (%p1619) target = $region32
        $region31: #{tpu_custom_call.1} parent=27 // pred_region
          %s1622 = smul.u32 4, %s18
          %s1624 = ssub.s32 64, 64
          %1625 = vsyncadd %s1610, %s1624
          %s1626 = smul.addr %s1622, 16
          %s1627 = scalar_lea.hbm %s2, %s1626
          %s1629 = sshll.u32 %s1613, 4
          %s1630 = int_to_ptr.vmem [resolvable:$true] %s1629
          %1632 = dma.vmem_to_hbm [thread:$0]  %s1630, 64, %s1627, %s1610
        $region32: #{tpu_custom_call.1} parent=27 // pred_fallthru
          _
        // Predicated region
        $region33: #{tpu_custom_call.1} parent=27 // pred_check
          %p1633 = pneg %p109
        $region34: #{tpu_custom_call.1} parent=27 // pred_check_branch
          %1635 = sbr.rel (%p1633) target = $region36
        $region35: #{tpu_custom_call.1} parent=27 // pred_region
          %s1636 = smul.u32 64, %s18
        $region36: #{tpu_custom_call.1} parent=27 // pred_fallthru
          _
      $region28: #{tpu_custom_call.1} parent=5 // pred_fallthru
        _
      %p1637 = scmp.le.s32.totalorder 2, %s13
      // Predicated region
      $region37: #{tpu_custom_call.1} parent=5 // pred_check
        %p1638 = pneg %p1637
      $region38: #{tpu_custom_call.1} parent=5 // pred_check_branch
        %1640 = sbr.rel (%p1638) target = $region40
      $region39: #{tpu_custom_call.1} parent=5 // pred_region
        %s1641 = ssub.s32 %s13, 2
        // Predicated region
        $region41: #{tpu_custom_call.1} parent=39 // pred_check
          %p1642 = pneg %p89
        $region42: #{tpu_custom_call.1} parent=39 // pred_check_branch
          %1644 = sbr.rel (%p1642) target = $region44
        $region43: #{tpu_custom_call.1} parent=39 // pred_region
          %s1645 = sand.u32 %s74, 1
          %s1646 = scalar_lea.sflag [#allocation3], %s1645
          %s1647 = sand.u32 %s74, 1
          %s1648 = smul.addr %s1647, 4
          %s1649 = scalar_lea.vmem [#allocation2], %s1648
          %1650 = dma.done %s1646, 64
        $region44: #{tpu_custom_call.1} parent=39 // pred_fallthru
          _
        // Predicated region
        $region45: #{tpu_custom_call.1} parent=39 // pred_check
          %p1651 = pneg %p115
        $region46: #{tpu_custom_call.1} parent=39 // pred_check_branch
          %1653 = sbr.rel (%p1651) target = $region48
        $region47: #{tpu_custom_call.1} parent=39 // pred_region
          %s1654 = smul.u32 64, %s19
          %p1655 = scmp.lt.s32.totalorder %s1654, 127
          %s1656 = scalar_select %p1655, %s1654, 127
          %s1657 = smul.addr %s1656, 8
          %s1658 = scalar_lea.vmem %s3, %s1657
        $region48: #{tpu_custom_call.1} parent=39 // pred_fallthru
          _
      $region40: #{tpu_custom_call.1} parent=5 // pred_fallthru
        _
    $region6: #{tpu_custom_call.1} parent=1 // loop_footer
      %s17 = sadd.s32 1, %s13
    $region7: #{tpu_custom_call.1} parent=1 // loop_footer_branch
      %12 = sbr.rel target = $region3
    $region8: #{tpu_custom_call.1} parent=1 // loop_exit
      _
    %1659 = vsyncpa [#allocation3], 1
    %s1660 = scalar_lea.sflag [#allocation3], 1
    %1661 = vsyncpa %s1660, 1

</llo_original>
